<compile_context>
chip_gen: v7x
topology: tpu7x:2x2x1
jax: 0.10.0
libtpu: 0.0.40
codegen_flags: <defaults>
</compile_context>

<pallas_src>
import functools

import jax
import jax.numpy as jnp
from jax.experimental import pallas as pl
from jax.experimental.pallas import tpu as pltpu


# ---------------------------------------------------------------------------
# Shared forward math: identical ops for the Pallas kernel and the reference.
# ---------------------------------------------------------------------------
def _mlp_math(x, w1, b1, w2, b2, w3_row, b3, act_dtype):
    """fc1 -> LeakyReLU(0.05) -> fc2 -> LeakyReLU(0.05) -> fc3 (out=1)."""
    neg = jnp.asarray(0.05, dtype=act_dtype)

    # fc1: bf16 operands on the MXU, f32 accumulation; epilogue in act_dtype.
    h1 = jnp.dot(x.astype(jnp.bfloat16), w1, preferred_element_type=jnp.float32)
    h1 = h1.astype(act_dtype) + b1.astype(act_dtype)
    h1 = jnp.maximum(h1, neg * h1)            # LeakyReLU(0.05), slope in (0,1)

    # fc2: h1 already bf16 on v6e/v7x -> the pre-matmul cast is a no-op there.
    h2 = jnp.dot(h1.astype(jnp.bfloat16), w2, preferred_element_type=jnp.float32)
    h2 = h2.astype(act_dtype) + b2.astype(act_dtype)
    h2 = jnp.maximum(h2, neg * h2)

    # fc3 (out_features == 1): per-lane multiply + reduction instead of a
    # degenerate 1-column MXU matmul.  Pre-sum the 128-lane tiles on the VPU
    # in f32 so only one XLU lane-reduce remains (less contention with the
    # fc2 vmatmul pushes on the vector-extended slot).
    prod = h2 * w3_row.astype(act_dtype)                       # [tb, H]
    hdim = prod.shape[-1]
    if hdim % 128 == 0 and hdim > 128:
        part = prod[:, 0:128].astype(jnp.float32)
        for off in range(128, hdim, 128):
            part = part + prod[:, off:off + 128].astype(jnp.float32)
        out = jnp.sum(part, axis=-1, keepdims=True)
    else:
        out = jnp.sum(prod.astype(jnp.float32), axis=-1, keepdims=True)
    return out + b3


def mlp_kernel(x_ref, w1_ref, b1_ref, w2_ref, b2_ref, w3_ref, b3_ref, o_ref,
               *, act_dtype):
    """Fused 3-layer MLP.  Padded tail rows (B % tile_b != 0) compute on
    Pallas-padded data but are never stored, so real outputs are unaffected."""
    out = _mlp_math(x_ref[...], w1_ref[...], b1_ref[...], w2_ref[...],
                    b2_ref[...], w3_ref[...], b3_ref[0, 0], act_dtype)
    o_ref[...] = out.astype(o_ref.dtype)


# ---------------------------------------------------------------------------
# Chip-aware tiling / precision heuristics.
# ---------------------------------------------------------------------------
def _device_kind():
    try:
        return jax.devices()[0].device_kind.lower()
    except Exception:
        return ""


def _is_v5(kind):
    return "v5" in kind


def _is_v7(kind):
    return "v7" in kind


def _round_up(x, m):
    return ((x + m - 1) // m) * m


def _pick_tile_b(B, kind):
    # Small batch: single grid step (per-step overhead ~0.35 us would dominate).
    if B <= 512:
        return B
    cap = 1024 if _is_v5(kind) else 2048
    if _is_v7(kind):
        # Keep >= 2 grid steps so both v7x TensorCores get work.
        tb = min(cap, _round_up(pl.cdiv(B, 2), 8))
    else:
        tb = min(cap, B)
    tb = min(tb, B)
    if tb < B:
        tb = min(_round_up(tb, 8), B)   # (8,128) block constraint on sublanes
    return tb


def _vmem_estimate_bytes(tile_b, D, H, act_itemsize):
    io = 2 * (tile_b * D * 4 + tile_b * 4)                     # x + out, 2x buffered
    weights = D * H * 2 + H * H * 2 + H * 2 + 2 * H * 4 + 4    # single-buffered
    inter = tile_b * H * (4 + 2 * act_itemsize) + tile_b * 128 * 4
    return io + weights + inter


# ---------------------------------------------------------------------------
# Wrapper.
# ---------------------------------------------------------------------------
def clip_classifier_forward(x, params, *, tile_b=None, act_dtype=None):
    """Runs the fused MLP kernel.  x: [B, dims] float32 -> [B, 1] float32."""
    w1, b1, w2, b2, w3, b3 = params
    B, D = x.shape
    H = w1.shape[1]          # 512
    O = 1                    # fc3 out_features

    kind = _device_kind()
    if act_dtype is None:
        # v5e is MXU-bound (keep f32 epilogue); v6e/v7x are VALU-bound and
        # bf16-native on the VPU -> bf16 epilogue halves the binding slot.
        act_dtype = jnp.float32 if _is_v5(kind) else jnp.bfloat16
    if tile_b is None:
        tile_b = _pick_tile_b(B, kind)
    tile_b = int(min(tile_b, B))

    grid = (pl.cdiv(B, tile_b),)

    # Weights / biases are grid-invariant -> single buffer.
    const_mode = pl.Buffered(buffer_count=1)

    grid_spec = pltpu.PrefetchScalarGridSpec(
        num_scalar_prefetch=0,
        grid=grid,
        in_specs=[
            pl.BlockSpec((tile_b, D), lambda i: (i, 0)),                       # x tile
            pl.BlockSpec((D, H), lambda i: (0, 0), pipeline_mode=const_mode),  # W1 bf16
            pl.BlockSpec((1, H), lambda i: (0, 0), pipeline_mode=const_mode),  # b1 f32
            pl.BlockSpec((H, H), lambda i: (0, 0), pipeline_mode=const_mode),  # W2 bf16
            pl.BlockSpec((1, H), lambda i: (0, 0), pipeline_mode=const_mode),  # b2 f32
            pl.BlockSpec((1, H), lambda i: (0, 0), pipeline_mode=const_mode),  # W3 row bf16
            pl.BlockSpec(memory_space=pltpu.MemorySpace.SMEM),                 # b3 scalar
        ],
        # TODO(synk): if profiling shows the masked [tile_b,1] store chain
        # exposed, switch to a lane-dense [1, B] output + wrapper reshape.
        out_specs=pl.BlockSpec((tile_b, O), lambda i: (i, 0)),
    )

    act_itemsize = 2 if act_dtype == jnp.bfloat16 else 4
    est = _vmem_estimate_bytes(tile_b, D, H, act_itemsize)
    # Raise the scoped-VMEM allowance for large tiles (above the 16 MiB v5e
    # default); cap well below v7x's 64 MiB physical VMEM.
    vmem_limit = int(min(max(32 << 20, 2 * est), 48 << 20))

    cost = pl.CostEstimate(
        flops=int(2 * B * (D * H + H * H + H)),
        transcendentals=0,
        bytes_accessed=int(x.size * x.dtype.itemsize
                           + sum(int(p.size) * p.dtype.itemsize for p in params)
                           + B * O * 4),
    )

    return pl.pallas_call(
        functools.partial(mlp_kernel, act_dtype=act_dtype),
        out_shape=jax.ShapeDtypeStruct((B, O), jnp.float32),
        grid_spec=grid_spec,
        compiler_params=pltpu.CompilerParams(
            # "parallel" lets the batch axis shard across TensorCores on v7x.
            # TODO(synk): profile pltpu.CORE_PARALLEL / core_map on v7x to
            # verify both TCs are used; "parallel" is the safe default here.
            dimension_semantics=("parallel",),
            vmem_limit_bytes=vmem_limit,
        ),
        cost_estimate=cost,
    )(x, w1, b1, w2, b2, w3, b3)


# ---------------------------------------------------------------------------
# Params / reference.
# ---------------------------------------------------------------------------
def init_params(key, dims, hidden=512, out=1):
    """Deterministic synthetic parameters (shapes match nn.Linear layers).
    Matmul weights are bf16 (inference-style mixed precision); biases f32."""
    k1, k2, k3, k4, k5, k6 = jax.random.split(key, 6)
    w1 = (jax.random.normal(k1, (dims, hidden), jnp.float32) * 0.02).astype(jnp.bfloat16)
    b1 = jax.random.normal(k2, (1, hidden), jnp.float32) * 0.02
    w2 = (jax.random.normal(k3, (hidden, hidden), jnp.float32) * 0.02).astype(jnp.bfloat16)
    b2 = jax.random.normal(k4, (1, hidden), jnp.float32) * 0.02
    # PyTorch fc3.weight layout: [out_features, in_features] = [1, 512]
    w3 = (jax.random.normal(k5, (out, hidden), jnp.float32) * 0.02).astype(jnp.bfloat16)
    b3 = jax.random.normal(k6, (1, out), jnp.float32) * 0.02
    return (w1, b1, w2, b2, w3, b3)


def reference_forward(x, params, act_dtype=None):
    """Plain-JAX reference mirroring the kernel's exact mixed-precision math."""
    if act_dtype is None:
        act_dtype = jnp.float32 if _is_v5(_device_kind()) else jnp.bfloat16
    w1, b1, w2, b2, w3, b3 = params
    return _mlp_math(x, w1, b1, w2, b2, w3, b3[0, 0], act_dtype)


if __name__ == "__main__":
    DIMS = 32                       # hidden=512, out=1 fixed by the module
    key = jax.random.PRNGKey(0)
    k_params, k_x1, k_x2 = jax.random.split(key, 3)
    params = init_params(k_params, DIMS)

    # 1) Default path: B=256 <= 512 -> single grid step (no wasted per-step
    #    overhead at small batch, per the perf review).
    B = 256
    x = jax.random.normal(k_x1, (B, DIMS), jnp.float32)
    out = jax.block_until_ready(clip_classifier_forward(x, params))
    ref = reference_forward(x, params)
    assert out.shape == (B, 1), out.shape
    err = float(jnp.max(jnp.abs(out - ref)))
    assert jnp.allclose(out, ref, atol=5e-3, rtol=5e-3), f"max err {err}"

    # 2) Multi-step grid + padded-tail path: B=200, tile_b=128 -> grid=(2,)
    #    with a 72-valid-row tail block.
    B2 = 200
    x2 = jax.random.normal(k_x2, (B2, DIMS), jnp.float32)
    out2 = jax.block_until_ready(clip_classifier_forward(x2, params, tile_b=128))
    ref2 = reference_forward(x2, params)
    assert out2.shape == (B2, 1), out2.shape
    err2 = float(jnp.max(jnp.abs(out2 - ref2)))
    assert jnp.allclose(out2, ref2, atol=5e-3, rtol=5e-3), f"max err {err2}"

    print("KERNEL_OK")
</pallas_src>

<mosaic_0001>
module attributes {stable_mosaic.version = 11 : i64} {
  func.func @mlp_kernel(%arg0: i32, %arg1: memref<256x32xf32, #tpu.memory_space<vmem>>, %arg2: memref<32x512xbf16, #tpu.memory_space<vmem>>, %arg3: memref<1x512xf32, #tpu.memory_space<vmem>>, %arg4: memref<512x512xbf16, #tpu.memory_space<vmem>>, %arg5: memref<1x512xf32, #tpu.memory_space<vmem>>, %arg6: memref<1x512xbf16, #tpu.memory_space<vmem>>, %arg7: memref<1x1xf32, #tpu.memory_space<smem>>, %arg8: memref<256x1xf32, #tpu.memory_space<vmem>>) attributes {dimension_semantics = [#tpu.dimension_semantics<parallel>], iteration_bounds = array<i64: 1>, scalar_prefetch = 0 : i64, scratch_operands = 0 : i64, tpu.core_type = #tpu.core_type<tc>, window_params = [{transform_indices = @transform_0, window_bounds = array<i64: 256, 32>}, {pipeline_mode = #tpu.pipeline_mode<synchronous>, transform_indices = @transform_1, window_bounds = array<i64: 32, 512>}, {pipeline_mode = #tpu.pipeline_mode<synchronous>, transform_indices = @transform_2, window_bounds = array<i64: 1, 512>}, {pipeline_mode = #tpu.pipeline_mode<synchronous>, transform_indices = @transform_3, window_bounds = array<i64: 512, 512>}, {pipeline_mode = #tpu.pipeline_mode<synchronous>, transform_indices = @transform_4, window_bounds = array<i64: 1, 512>}, {pipeline_mode = #tpu.pipeline_mode<synchronous>, transform_indices = @transform_5, window_bounds = array<i64: 1, 512>}, {transform_indices = @transform_6, window_bounds = array<i64: 1, 1>}, {transform_indices = @transform_7, window_bounds = array<i64: 256, 1>}]} {
    %c0 = arith.constant 0 : index
    %c0_0 = arith.constant 0 : index
    %0 = vector.load %arg1[%c0, %c0_0] : memref<256x32xf32, #tpu.memory_space<vmem>>, vector<256x32xf32>
    %c0_1 = arith.constant 0 : index
    %c0_2 = arith.constant 0 : index
    %1 = vector.load %arg2[%c0_1, %c0_2] : memref<32x512xbf16, #tpu.memory_space<vmem>>, vector<32x512xbf16>
    %c0_3 = arith.constant 0 : index
    %c0_4 = arith.constant 0 : index
    %2 = vector.load %arg3[%c0_3, %c0_4] : memref<1x512xf32, #tpu.memory_space<vmem>>, vector<1x512xf32>
    %c0_5 = arith.constant 0 : index
    %c0_6 = arith.constant 0 : index
    %3 = vector.load %arg4[%c0_5, %c0_6] : memref<512x512xbf16, #tpu.memory_space<vmem>>, vector<512x512xbf16>
    %c0_7 = arith.constant 0 : index
    %c0_8 = arith.constant 0 : index
    %4 = vector.load %arg5[%c0_7, %c0_8] : memref<1x512xf32, #tpu.memory_space<vmem>>, vector<1x512xf32>
    %c0_9 = arith.constant 0 : index
    %c0_10 = arith.constant 0 : index
    %5 = vector.load %arg6[%c0_9, %c0_10] : memref<1x512xbf16, #tpu.memory_space<vmem>>, vector<1x512xbf16>
    %c0_11 = arith.constant 0 : index
    %c0_12 = arith.constant 0 : index
    %6 = memref.load %arg7[%c0_11, %c0_12] : memref<1x1xf32, #tpu.memory_space<smem>>
    %7 = arith.truncf %0 : vector<256x32xf32> to vector<256x32xbf16>
    %cst = arith.constant dense<0.000000e+00> : vector<256x512xf32>
    %8 = tpu.matmul %7, %1, %cst {dimension_numbers = #tpu.dot_dimension_numbers<[1], [0], [0], [1], [0, 0, 1, 1], [], []>} : vector<256x32xbf16>, vector<32x512xbf16>, vector<256x512xf32> -> vector<256x512xf32>
    %9 = arith.truncf %8 : vector<256x512xf32> to vector<256x512xbf16>
    %10 = arith.truncf %2 : vector<1x512xf32> to vector<1x512xbf16>
    %11 = vector.broadcast %10 : vector<1x512xbf16> to vector<256x512xbf16>
    %12 = arith.addf %9, %11 : vector<256x512xbf16>
    %cst_13 = arith.constant 5.004880e-02 : bf16
    %13 = vector.broadcast %cst_13 : bf16 to vector<256x512xbf16>
    %14 = arith.mulf %13, %12 : vector<256x512xbf16>
    %15 = arith.maximumf %12, %14 : vector<256x512xbf16>
    %cst_14 = arith.constant dense<0.000000e+00> : vector<256x512xf32>
    %16 = tpu.matmul %15, %3, %cst_14 {dimension_numbers = #tpu.dot_dimension_numbers<[1], [0], [0], [1], [0, 0, 1, 1], [], []>} : vector<256x512xbf16>, vector<512x512xbf16>, vector<256x512xf32> -> vector<256x512xf32>
    %17 = arith.truncf %16 : vector<256x512xf32> to vector<256x512xbf16>
    %18 = arith.truncf %4 : vector<1x512xf32> to vector<1x512xbf16>
    %19 = vector.broadcast %18 : vector<1x512xbf16> to vector<256x512xbf16>
    %20 = arith.addf %17, %19 : vector<256x512xbf16>
    %cst_15 = arith.constant 5.004880e-02 : bf16
    %21 = vector.broadcast %cst_15 : bf16 to vector<256x512xbf16>
    %22 = arith.mulf %21, %20 : vector<256x512xbf16>
    %23 = arith.maximumf %20, %22 : vector<256x512xbf16>
    %24 = vector.broadcast %5 : vector<1x512xbf16> to vector<256x512xbf16>
    %25 = arith.mulf %23, %24 : vector<256x512xbf16>
    %26 = vector.extract_strided_slice %25 {offsets = [0, 0], sizes = [256, 128], strides = [1, 1]} : vector<256x512xbf16> to vector<256x128xbf16>
    %27 = arith.extf %26 : vector<256x128xbf16> to vector<256x128xf32>
    %28 = vector.extract_strided_slice %25 {offsets = [0, 128], sizes = [256, 128], strides = [1, 1]} : vector<256x512xbf16> to vector<256x128xbf16>
    %29 = arith.extf %28 : vector<256x128xbf16> to vector<256x128xf32>
    %30 = arith.addf %27, %29 : vector<256x128xf32>
    %31 = vector.extract_strided_slice %25 {offsets = [0, 256], sizes = [256, 128], strides = [1, 1]} : vector<256x512xbf16> to vector<256x128xbf16>
    %32 = arith.extf %31 : vector<256x128xbf16> to vector<256x128xf32>
    %33 = arith.addf %30, %32 : vector<256x128xf32>
    %34 = vector.extract_strided_slice %25 {offsets = [0, 384], sizes = [256, 128], strides = [1, 1]} : vector<256x512xbf16> to vector<256x128xbf16>
    %35 = arith.extf %34 : vector<256x128xbf16> to vector<256x128xf32>
    %36 = arith.addf %33, %35 : vector<256x128xf32>
    %cst_16 = arith.constant dense<0.000000e+00> : vector<256xf32>
    %37 = vector.multi_reduction <add>, %36, %cst_16 [1] : vector<256x128xf32> to vector<256xf32>
    %38 = vector.shape_cast %37 : vector<256xf32> to vector<256x1xf32>
    %39 = vector.broadcast %6 : f32 to vector<256x1xf32>
    %40 = arith.addf %38, %39 : vector<256x1xf32>
    %c0_17 = arith.constant 0 : index
    %c0_18 = arith.constant 0 : index
    %41 = vector.load %arg8[%c0_17, %c0_18] : memref<256x1xf32, #tpu.memory_space<vmem>>, vector<256x1xf32>
    tpu.vector_store %arg8[%c0_17, %c0_18], %40 {strides = array<i32>} : memref<256x1xf32, #tpu.memory_space<vmem>>, vector<256x1xf32>,
    return
  }
  func.func @transform_0(%arg0: i32) -> (i32, i32) {
    %c0_i32 = arith.constant 0 : i32
    %c0_i32_0 = arith.constant 0 : i32
    return %arg0, %c0_i32 : i32, i32
  }
  func.func @transform_1(%arg0: i32) -> (i32, i32) {
    %c0_i32 = arith.constant 0 : i32
    %c0_i32_0 = arith.constant 0 : i32
    %c0_i32_1 = arith.constant 0 : i32
    return %c0_i32, %c0_i32_0 : i32, i32
  }
  func.func @transform_2(%arg0: i32) -> (i32, i32) {
    %c0_i32 = arith.constant 0 : i32
    %c0_i32_0 = arith.constant 0 : i32
    %c0_i32_1 = arith.constant 0 : i32
    return %c0_i32, %c0_i32_0 : i32, i32
  }
  func.func @transform_3(%arg0: i32) -> (i32, i32) {
    %c0_i32 = arith.constant 0 : i32
    %c0_i32_0 = arith.constant 0 : i32
    %c0_i32_1 = arith.constant 0 : i32
    return %c0_i32, %c0_i32_0 : i32, i32
  }
  func.func @transform_4(%arg0: i32) -> (i32, i32) {
    %c0_i32 = arith.constant 0 : i32
    %c0_i32_0 = arith.constant 0 : i32
    %c0_i32_1 = arith.constant 0 : i32
    return %c0_i32, %c0_i32_0 : i32, i32
  }
  func.func @transform_5(%arg0: i32) -> (i32, i32) {
    %c0_i32 = arith.constant 0 : i32
    %c0_i32_0 = arith.constant 0 : i32
    %c0_i32_1 = arith.constant 0 : i32
    return %c0_i32, %c0_i32_0 : i32, i32
  }
  func.func @transform_6(%arg0: i32) -> (i32, i32) {
    %c0_i32 = arith.constant 0 : i32
    %c0_i32_0 = arith.constant 0 : i32
    %c0_i32_1 = arith.constant 0 : i32
    return %c0_i32, %c0_i32_0 : i32, i32
  }
  func.func @transform_7(%arg0: i32) -> (i32, i32) {
    %c0_i32 = arith.constant 0 : i32
    %c0_i32_0 = arith.constant 0 : i32
    return %arg0, %c0_i32 : i32, i32
  }
}

</mosaic_0001>

<llo_original>
// kernel: tpu_custom_call.1
$region0: #{tpu_custom_call.1}
  #allocation0 [shape = 'u32[]', space=smem, size = 0x4, offset = 0x4, fixed_abs, tag = 'smem constant byte address 0x4 - core index']
  #allocation1 [shape = 'u32[144,128]{1,0:T(1,128)}', space=vmem, size = 0x12000, scoped, tag = 'internal scratch']
  #allocation2 [shape = 'f32[1,1]{1,0:T(1,128)S(6)}', space=smem, size = 0x200, scoped, tag = 'scoped memory for tpu_custom_call.1']
  %s0 = inlined_call_operand.vmem [shape: f32[256,32], index: 0, kind: input, shape index: {}]
  %s1 = inlined_call_operand.vmem [shape: bf16[32,512], index: 1, kind: input, shape index: {}]
  %s2 = inlined_call_operand.vmem [shape: f32[1,512], index: 2, kind: input, shape index: {}]
  %s3 = inlined_call_operand.hbm [shape: bf16[512,512], index: 3, kind: input, shape index: {}]
  %s4 = inlined_call_operand.vmem [shape: f32[1,512], index: 4, kind: input, shape index: {}]
  %s5 = inlined_call_operand.vmem [shape: bf16[1,512], index: 5, kind: input, shape index: {}]
  %s6 = inlined_call_operand.<no memory space> [shape: f32[1,1], index: 6, kind: input, shape index: {}]
  %s7 = inlined_call_operand.vmem [shape: f32[256,1], index: 7, kind: output, shape index: {}]
  %s8 = sld [smem:[#allocation0]]
  $region42: #{tpu_custom_call.1} parent=0
    _
  %s10 = ssub.s32 1, %s8
  %s11 = scalar_select 0, %s10, %s8
  %12 = sst [smem:[#allocation2]] %s6
  $region1: #{tpu_custom_call.1} parent=0
    #allocation3 [shape = 'u8[524288]{0}', space=vmem, size = 0x80000, scoped, tag = 'input window, operand 3, single buffered']
    #allocation4 [shape = 's32[1]{0}', space=sflag, size = 0x4, scoped, tag = 'scoped memory for tpu_custom_call.1']
    %13 = vsyncpa [#allocation4], 0
    // Predicated region
    $region2: #{tpu_custom_call.1} parent=1 // pred_check
      _
    $region3: #{tpu_custom_call.1} parent=1 // pred_check_branch
      %15 = sbr.rel (0) target = $region5
    $region4: #{tpu_custom_call.1} parent=1 // pred_region
      _
    $region5: #{tpu_custom_call.1} parent=1 // pred_fallthru
      _
    // Predicated region
    $region6: #{tpu_custom_call.1} parent=1 // pred_check
      _
    $region7: #{tpu_custom_call.1} parent=1 // pred_check_branch
      %17 = sbr.rel (0) target = $region9
    $region8: #{tpu_custom_call.1} parent=1 // pred_region
      _
    $region9: #{tpu_custom_call.1} parent=1 // pred_fallthru
      _
    // Predicated region
    $region10: #{tpu_custom_call.1} parent=1 // pred_check
      _
    $region11: #{tpu_custom_call.1} parent=1 // pred_check_branch
      %19 = sbr.rel (0) target = $region13
    $region12: #{tpu_custom_call.1} parent=1 // pred_region
      _
    $region13: #{tpu_custom_call.1} parent=1 // pred_fallthru
      _
    // Predicated region
    $region14: #{tpu_custom_call.1} parent=1 // pred_check
      _
    $region15: #{tpu_custom_call.1} parent=1 // pred_check_branch
      %21 = sbr.rel (0) target = $region17
    $region16: #{tpu_custom_call.1} parent=1 // pred_region
      %s23 = ssub.s32 16384, 16384
      %24 = vsyncadd [#allocation4], %s23
      %s25 = sshll.u32 [#allocation3], 4
      %s26 = int_to_ptr.vmem [resolvable:$true] %s25
      %31 = dma.hbm_to_vmem [thread:$0]  %s3, 16384, %s26, [#allocation4], 256, 256, 16
    $region17: #{tpu_custom_call.1} parent=1 // pred_fallthru
      _
    // Predicated region
    $region18: #{tpu_custom_call.1} parent=1 // pred_check
      _
    $region19: #{tpu_custom_call.1} parent=1 // pred_check_branch
      %33 = sbr.rel (0) target = $region21
    $region20: #{tpu_custom_call.1} parent=1 // pred_region
      _
    $region21: #{tpu_custom_call.1} parent=1 // pred_fallthru
      _
    // Predicated region
    $region22: #{tpu_custom_call.1} parent=1 // pred_check
      _
    $region23: #{tpu_custom_call.1} parent=1 // pred_check_branch
      %35 = sbr.rel (0) target = $region25
    $region24: #{tpu_custom_call.1} parent=1 // pred_region
      _
    $region25: #{tpu_custom_call.1} parent=1 // pred_fallthru
      _
    // Predicated region
    $region26: #{tpu_custom_call.1} parent=1 // pred_check
      _
    $region27: #{tpu_custom_call.1} parent=1 // pred_check_branch
      %37 = sbr.rel (0) target = $region29
    $region28: #{tpu_custom_call.1} parent=1 // pred_region
      _
    $region29: #{tpu_custom_call.1} parent=1 // pred_fallthru
      _
    // Predicated region
    $region30: #{tpu_custom_call.1} parent=1 // pred_check
      _
    $region31: #{tpu_custom_call.1} parent=1 // pred_check_branch
      %39 = sbr.rel (0) target = $region33
    $region32: #{tpu_custom_call.1} parent=1 // pred_region
      %40 = dma.done [#allocation4], 16384
    $region33: #{tpu_custom_call.1} parent=1 // pred_fallthru
      _
    %v43 = vld [vmem:[%s0] sm:$0xff]
    %v44 = vld [vmem:[%s0 + $0x8] sm:$0xff]
    %v45 = vld [vmem:[%s0 + $0x10] sm:$0xff]
    %v46 = vld [vmem:[%s0 + $0x18] sm:$0xff]
    %v47 = vld [vmem:[%s0 + $0x20] sm:$0xff]
    %v48 = vld [vmem:[%s0 + $0x28] sm:$0xff]
    %v49 = vld [vmem:[%s0 + $0x30] sm:$0xff]
    %v50 = vld [vmem:[%s0 + $0x38] sm:$0xff]
    %v51 = vld [vmem:[%s0 + $0x40] sm:$0xff]
    %v52 = vld [vmem:[%s0 + $0x48] sm:$0xff]
    %v53 = vld [vmem:[%s0 + $0x50] sm:$0xff]
    %v54 = vld [vmem:[%s0 + $0x58] sm:$0xff]
    %v55 = vld [vmem:[%s0 + $0x60] sm:$0xff]
    %v56 = vld [vmem:[%s0 + $0x68] sm:$0xff]
    %v57 = vld [vmem:[%s0 + $0x70] sm:$0xff]
    %v58 = vld [vmem:[%s0 + $0x78] sm:$0xff]
    %v59 = vld [vmem:[%s0 + $0x80] sm:$0xff]
    %v60 = vld [vmem:[%s0 + $0x88] sm:$0xff]
    %v61 = vld [vmem:[%s0 + $0x90] sm:$0xff]
    %v62 = vld [vmem:[%s0 + $0x98] sm:$0xff]
    %v63 = vld [vmem:[%s0 + $0xa0] sm:$0xff]
    %v64 = vld [vmem:[%s0 + $0xa8] sm:$0xff]
    %v65 = vld [vmem:[%s0 + $0xb0] sm:$0xff]
    %v66 = vld [vmem:[%s0 + $0xb8] sm:$0xff]
    %v67 = vld [vmem:[%s0 + $0xc0] sm:$0xff]
    %v68 = vld [vmem:[%s0 + $0xc8] sm:$0xff]
    %v69 = vld [vmem:[%s0 + $0xd0] sm:$0xff]
    %v70 = vld [vmem:[%s0 + $0xd8] sm:$0xff]
    %v71 = vld [vmem:[%s0 + $0xe0] sm:$0xff]
    %v72 = vld [vmem:[%s0 + $0xe8] sm:$0xff]
    %v73 = vld [vmem:[%s0 + $0xf0] sm:$0xff]
    %v74 = vld [vmem:[%s0 + $0xf8] sm:$0xff]
    %v75 = vld [vmem:[%s1] sm:$0xff]
    %v76 = vld [vmem:[%s1 + $0x8] sm:$0xff]
    %v77 = vld [vmem:[%s1 + $0x10] sm:$0xff]
    %v78 = vld [vmem:[%s1 + $0x18] sm:$0xff]
    %v79 = vld [vmem:[%s1 + $0x20] sm:$0xff]
    %v80 = vld [vmem:[%s1 + $0x28] sm:$0xff]
    %v81 = vld [vmem:[%s1 + $0x30] sm:$0xff]
    %v82 = vld [vmem:[%s1 + $0x38] sm:$0xff]
    %v83 = vld [vmem:[%s2] sm:$0xf]
    %v84 = vld [vmem:[#allocation3] sm:$0xff]
    %v85 = vld [vmem:[#allocation3 + $0x8] sm:$0xff]
    %v86 = vld [vmem:[#allocation3 + $0x10] sm:$0xff]
    %v87 = vld [vmem:[#allocation3 + $0x18] sm:$0xff]
    %v88 = vld [vmem:[#allocation3 + $0x20] sm:$0xff]
    %v89 = vld [vmem:[#allocation3 + $0x28] sm:$0xff]
    %v90 = vld [vmem:[#allocation3 + $0x30] sm:$0xff]
    %v91 = vld [vmem:[#allocation3 + $0x38] sm:$0xff]
    %v92 = vld [vmem:[#allocation3 + $0x40] sm:$0xff]
    %v93 = vld [vmem:[#allocation3 + $0x48] sm:$0xff]
    %v94 = vld [vmem:[#allocation3 + $0x50] sm:$0xff]
    %v95 = vld [vmem:[#allocation3 + $0x58] sm:$0xff]
    %v96 = vld [vmem:[#allocation3 + $0x60] sm:$0xff]
    %v97 = vld [vmem:[#allocation3 + $0x68] sm:$0xff]
    %v98 = vld [vmem:[#allocation3 + $0x70] sm:$0xff]
    %v99 = vld [vmem:[#allocation3 + $0x78] sm:$0xff]
    %v100 = vld [vmem:[#allocation3 + $0x80] sm:$0xff]
    %v101 = vld [vmem:[#allocation3 + $0x88] sm:$0xff]
    %v102 = vld [vmem:[#allocation3 + $0x90] sm:$0xff]
    %v103 = vld [vmem:[#allocation3 + $0x98] sm:$0xff]
    %v104 = vld [vmem:[#allocation3 + $0xa0] sm:$0xff]
    %v105 = vld [vmem:[#allocation3 + $0xa8] sm:$0xff]
    %v106 = vld [vmem:[#allocation3 + $0xb0] sm:$0xff]
    %v107 = vld [vmem:[#allocation3 + $0xb8] sm:$0xff]
    %v108 = vld [vmem:[#allocation3 + $0xc0] sm:$0xff]
    %v109 = vld [vmem:[#allocation3 + $0xc8] sm:$0xff]
    %v110 = vld [vmem:[#allocation3 + $0xd0] sm:$0xff]
    %v111 = vld [vmem:[#allocation3 + $0xd8] sm:$0xff]
    %v112 = vld [vmem:[#allocation3 + $0xe0] sm:$0xff]
    %v113 = vld [vmem:[#allocation3 + $0xe8] sm:$0xff]
    %v114 = vld [vmem:[#allocation3 + $0xf0] sm:$0xff]
    %v115 = vld [vmem:[#allocation3 + $0xf8] sm:$0xff]
    %v116 = vld [vmem:[#allocation3 + $0x100] sm:$0xff]
    %v117 = vld [vmem:[#allocation3 + $0x108] sm:$0xff]
    %v118 = vld [vmem:[#allocation3 + $0x110] sm:$0xff]
    %v119 = vld [vmem:[#allocation3 + $0x118] sm:$0xff]
    %v120 = vld [vmem:[#allocation3 + $0x120] sm:$0xff]
    %v121 = vld [vmem:[#allocation3 + $0x128] sm:$0xff]
    %v122 = vld [vmem:[#allocation3 + $0x130] sm:$0xff]
    %v123 = vld [vmem:[#allocation3 + $0x138] sm:$0xff]
    %v124 = vld [vmem:[#allocation3 + $0x140] sm:$0xff]
    %v125 = vld [vmem:[#allocation3 + $0x148] sm:$0xff]
    %v126 = vld [vmem:[#allocation3 + $0x150] sm:$0xff]
    %v127 = vld [vmem:[#allocation3 + $0x158] sm:$0xff]
    %v128 = vld [vmem:[#allocation3 + $0x160] sm:$0xff]
    %v129 = vld [vmem:[#allocation3 + $0x168] sm:$0xff]
    %v130 = vld [vmem:[#allocation3 + $0x170] sm:$0xff]
    %v131 = vld [vmem:[#allocation3 + $0x178] sm:$0xff]
    %v132 = vld [vmem:[#allocation3 + $0x180] sm:$0xff]
    %v133 = vld [vmem:[#allocation3 + $0x188] sm:$0xff]
    %v134 = vld [vmem:[#allocation3 + $0x190] sm:$0xff]
    %v135 = vld [vmem:[#allocation3 + $0x198] sm:$0xff]
    %v136 = vld [vmem:[#allocation3 + $0x1a0] sm:$0xff]
    %v137 = vld [vmem:[#allocation3 + $0x1a8] sm:$0xff]
    %v138 = vld [vmem:[#allocation3 + $0x1b0] sm:$0xff]
    %v139 = vld [vmem:[#allocation3 + $0x1b8] sm:$0xff]
    %v140 = vld [vmem:[#allocation3 + $0x1c0] sm:$0xff]
    %v141 = vld [vmem:[#allocation3 + $0x1c8] sm:$0xff]
    %v142 = vld [vmem:[#allocation3 + $0x1d0] sm:$0xff]
    %v143 = vld [vmem:[#allocation3 + $0x1d8] sm:$0xff]
    %v144 = vld [vmem:[#allocation3 + $0x1e0] sm:$0xff]
    %v145 = vld [vmem:[#allocation3 + $0x1e8] sm:$0xff]
    %v146 = vld [vmem:[#allocation3 + $0x1f0] sm:$0xff]
    %v147 = vld [vmem:[#allocation3 + $0x1f8] sm:$0xff]
    %v148 = vld [vmem:[#allocation3 + $0x200] sm:$0xff]
    %v149 = vld [vmem:[#allocation3 + $0x208] sm:$0xff]
    %v150 = vld [vmem:[#allocation3 + $0x210] sm:$0xff]
    %v151 = vld [vmem:[#allocation3 + $0x218] sm:$0xff]
    %v152 = vld [vmem:[#allocation3 + $0x220] sm:$0xff]
    %v153 = vld [vmem:[#allocation3 + $0x228] sm:$0xff]
    %v154 = vld [vmem:[#allocation3 + $0x230] sm:$0xff]
    %v155 = vld [vmem:[#allocation3 + $0x238] sm:$0xff]
    %v156 = vld [vmem:[#allocation3 + $0x240] sm:$0xff]
    %v157 = vld [vmem:[#allocation3 + $0x248] sm:$0xff]
    %v158 = vld [vmem:[#allocation3 + $0x250] sm:$0xff]
    %v159 = vld [vmem:[#allocation3 + $0x258] sm:$0xff]
    %v160 = vld [vmem:[#allocation3 + $0x260] sm:$0xff]
    %v161 = vld [vmem:[#allocation3 + $0x268] sm:$0xff]
    %v162 = vld [vmem:[#allocation3 + $0x270] sm:$0xff]
    %v163 = vld [vmem:[#allocation3 + $0x278] sm:$0xff]
    %v164 = vld [vmem:[#allocation3 + $0x280] sm:$0xff]
    %v165 = vld [vmem:[#allocation3 + $0x288] sm:$0xff]
    %v166 = vld [vmem:[#allocation3 + $0x290] sm:$0xff]
    %v167 = vld [vmem:[#allocation3 + $0x298] sm:$0xff]
    %v168 = vld [vmem:[#allocation3 + $0x2a0] sm:$0xff]
    %v169 = vld [vmem:[#allocation3 + $0x2a8] sm:$0xff]
    %v170 = vld [vmem:[#allocation3 + $0x2b0] sm:$0xff]
    %v171 = vld [vmem:[#allocation3 + $0x2b8] sm:$0xff]
    %v172 = vld [vmem:[#allocation3 + $0x2c0] sm:$0xff]
    %v173 = vld [vmem:[#allocation3 + $0x2c8] sm:$0xff]
    %v174 = vld [vmem:[#allocation3 + $0x2d0] sm:$0xff]
    %v175 = vld [vmem:[#allocation3 + $0x2d8] sm:$0xff]
    %v176 = vld [vmem:[#allocation3 + $0x2e0] sm:$0xff]
    %v177 = vld [vmem:[#allocation3 + $0x2e8] sm:$0xff]
    %v178 = vld [vmem:[#allocation3 + $0x2f0] sm:$0xff]
    %v179 = vld [vmem:[#allocation3 + $0x2f8] sm:$0xff]
    %v180 = vld [vmem:[#allocation3 + $0x300] sm:$0xff]
    %v181 = vld [vmem:[#allocation3 + $0x308] sm:$0xff]
    %v182 = vld [vmem:[#allocation3 + $0x310] sm:$0xff]
    %v183 = vld [vmem:[#allocation3 + $0x318] sm:$0xff]
    %v184 = vld [vmem:[#allocation3 + $0x320] sm:$0xff]
    %v185 = vld [vmem:[#allocation3 + $0x328] sm:$0xff]
    %v186 = vld [vmem:[#allocation3 + $0x330] sm:$0xff]
    %v187 = vld [vmem:[#allocation3 + $0x338] sm:$0xff]
    %v188 = vld [vmem:[#allocation3 + $0x340] sm:$0xff]
    %v189 = vld [vmem:[#allocation3 + $0x348] sm:$0xff]
    %v190 = vld [vmem:[#allocation3 + $0x350] sm:$0xff]
    %v191 = vld [vmem:[#allocation3 + $0x358] sm:$0xff]
    %v192 = vld [vmem:[#allocation3 + $0x360] sm:$0xff]
    %v193 = vld [vmem:[#allocation3 + $0x368] sm:$0xff]
    %v194 = vld [vmem:[#allocation3 + $0x370] sm:$0xff]
    %v195 = vld [vmem:[#allocation3 + $0x378] sm:$0xff]
    %v196 = vld [vmem:[#allocation3 + $0x380] sm:$0xff]
    %v197 = vld [vmem:[#allocation3 + $0x388] sm:$0xff]
    %v198 = vld [vmem:[#allocation3 + $0x390] sm:$0xff]
    %v199 = vld [vmem:[#allocation3 + $0x398] sm:$0xff]
    %v200 = vld [vmem:[#allocation3 + $0x3a0] sm:$0xff]
    %v201 = vld [vmem:[#allocation3 + $0x3a8] sm:$0xff]
    %v202 = vld [vmem:[#allocation3 + $0x3b0] sm:$0xff]
    %v203 = vld [vmem:[#allocation3 + $0x3b8] sm:$0xff]
    %v204 = vld [vmem:[#allocation3 + $0x3c0] sm:$0xff]
    %v205 = vld [vmem:[#allocation3 + $0x3c8] sm:$0xff]
    %v206 = vld [vmem:[#allocation3 + $0x3d0] sm:$0xff]
    %v207 = vld [vmem:[#allocation3 + $0x3d8] sm:$0xff]
    %v208 = vld [vmem:[#allocation3 + $0x3e0] sm:$0xff]
    %v209 = vld [vmem:[#allocation3 + $0x3e8] sm:$0xff]
    %v210 = vld [vmem:[#allocation3 + $0x3f0] sm:$0xff]
    %v211 = vld [vmem:[#allocation3 + $0x3f8] sm:$0xff]
    %v212 = vld [vmem:[%s4] sm:$0xf]
    %v213 = vld [vmem:[%s5] sm:$0xf]
    %s214 = sld [smem:[#allocation2]]
    %v215 = vpack.c.bf16 %v44, %v43
    %v216 = vpack.c.bf16 %v46, %v45
    %v217 = vpack.c.bf16 %v48, %v47
    %v218 = vpack.c.bf16 %v50, %v49
    %v219 = vpack.c.bf16 %v52, %v51
    %v220 = vpack.c.bf16 %v54, %v53
    %v221 = vpack.c.bf16 %v56, %v55
    %v222 = vpack.c.bf16 %v58, %v57
    %v223 = vpack.c.bf16 %v60, %v59
    %v224 = vpack.c.bf16 %v62, %v61
    %v225 = vpack.c.bf16 %v64, %v63
    %v226 = vpack.c.bf16 %v66, %v65
    %v227 = vpack.c.bf16 %v68, %v67
    %v228 = vpack.c.bf16 %v70, %v69
    %v229 = vpack.c.bf16 %v72, %v71
    %v230 = vpack.c.bf16 %v74, %v73
    %v239 = vunpack.c.l.b16 %v75
    %v240 = vunpack.c.h.b16 %v75
    %v241 = vunpack.c.l.b16 %v76
    %v242 = vunpack.c.h.b16 %v76
    %v243 = vunpack.c.l.b16 %v77
    %v244 = vunpack.c.h.b16 %v77
    %v245 = vunpack.c.l.b16 %v78
    %v246 = vunpack.c.h.b16 %v78
    %v247 = vunpack.c.l.b16 %v79
    %v248 = vunpack.c.h.b16 %v79
    %v249 = vunpack.c.l.b16 %v80
    %v250 = vunpack.c.h.b16 %v80
    %v251 = vunpack.c.l.b16 %v81
    %v252 = vunpack.c.h.b16 %v81
    %v253 = vunpack.c.l.b16 %v82
    %v254 = vunpack.c.h.b16 %v82
    %v255 = vpack.c.b16 %v243, %v239
    %v256 = vpack.c.b16 %v244, %v240
    %v257 = vpack.c.b16 %v245, %v241
    %v258 = vpack.c.b16 %v246, %v242
    %v259 = vpack.c.b16 %v251, %v247
    %v260 = vpack.c.b16 %v252, %v248
    %v261 = vpack.c.b16 %v253, %v249
    %v262 = vpack.c.b16 %v254, %v250
    %vm271 = vcmask 261120
    %v273 = vsel %vm271, %v215, 0
    %v276 = vsel %vm271, %v216, 0
    %v279 = vsel %vm271, %v217, 0
    %v282 = vsel %vm271, %v218, 0
    %v285 = vsel %vm271, %v219, 0
    %v288 = vsel %vm271, %v220, 0
    %v291 = vsel %vm271, %v221, 0
    %v294 = vsel %vm271, %v222, 0
    %v297 = vsel %vm271, %v223, 0
    %v300 = vsel %vm271, %v224, 0
    %v303 = vsel %vm271, %v225, 0
    %v306 = vsel %vm271, %v226, 0
    %v309 = vsel %vm271, %v227, 0
    %v312 = vsel %vm271, %v228, 0
    %v315 = vsel %vm271, %v229, 0
    %v318 = vsel %vm271, %v230, 0
    %320 = vmatprep.subr.bf16.mxu0 %v256
    %321 = vmatpush1.bf16.msra.mxu0 %v255
    %322 = vmatprep.subr.bf16.mxu0 %v260
    %323 = vmatpush1.bf16.msra.mxu0 %v259
    %324 = vmatprep.subr.bf16.mxu0 0
    %325 = vmatpush1.bf16.msra.mxu0 0
    %326 = vmatprep.subr.bf16.mxu0 0
    %327 = vmatpush1.bf16.msra.mxu0 0
    %328 = vmatprep.subr.bf16.mxu0 0
    %329 = vmatpush1.bf16.msra.mxu0 0
    %330 = vmatprep.subr.bf16.mxu0 0
    %331 = vmatpush1.bf16.msra.mxu0 0
    %332 = vmatprep.subr.bf16.mxu0 0
    %333 = vmatpush1.bf16.msra.mxu0 0
    %334 = vmatprep.subr.bf16.mxu0 0
    %335 = vmatpush1.bf16.msra.mxu0 0
    %336 = vmatprep.subr.bf16.mxu0 0
    %337 = vmatpush1.bf16.msra.mxu0 0
    %338 = vmatprep.subr.bf16.mxu0 0
    %339 = vmatpush1.bf16.msra.mxu0 0
    %340 = vmatprep.subr.bf16.mxu0 0
    %341 = vmatpush1.bf16.msra.mxu0 0
    %342 = vmatprep.subr.bf16.mxu0 0
    %343 = vmatpush1.bf16.msra.mxu0 0
    %344 = vmatprep.subr.bf16.mxu0 0
    %345 = vmatpush1.bf16.msra.mxu0 0
    %346 = vmatprep.subr.bf16.mxu0 0
    %347 = vmatpush1.bf16.msra.mxu0 0
    %348 = vmatprep.subr.bf16.mxu0 0
    %349 = vmatpush1.bf16.msra.mxu0 0
    %350 = vmatprep.subr.bf16.mxu0 0
    %351 = vmatpush1.bf16.msra.mxu0 0
    %352 = vmatprep.mubr.bf16.mxu0 0
    %353 = vmatmul.mubr.bf16.gmra.mrb[0].mxu0 %v273
    %v354 = vpop.f32.mrb[0].mxu0
    %v355 = vadd.f32 0.0, %v354
    %v356 = vpop.f32.mrb[0].mxu0
    %v357 = vadd.f32 0.0, %v356
    %v358 = vpop.f32.mrb[0].mxu0
    %v359 = vadd.f32 0.0, %v358
    %v360 = vpop.f32.mrb[0].mxu0
    %v361 = vadd.f32 0.0, %v360
    %362 = vmatprep.mubr.bf16.mxu0 0
    %363 = vmatmul.mubr.bf16.gmra.mrb[0].mxu0 %v276
    %v364 = vpop.f32.mrb[0].mxu0
    %v365 = vadd.f32 0.0, %v364
    %v366 = vpop.f32.mrb[0].mxu0
    %v367 = vadd.f32 0.0, %v366
    %v368 = vpop.f32.mrb[0].mxu0
    %v369 = vadd.f32 0.0, %v368
    %v370 = vpop.f32.mrb[0].mxu0
    %v371 = vadd.f32 0.0, %v370
    %372 = vmatprep.mubr.bf16.mxu0 0
    %373 = vmatmul.mubr.bf16.gmra.mrb[0].mxu0 %v279
    %v374 = vpop.f32.mrb[0].mxu0
    %v375 = vadd.f32 0.0, %v374
    %v376 = vpop.f32.mrb[0].mxu0
    %v377 = vadd.f32 0.0, %v376
    %v378 = vpop.f32.mrb[0].mxu0
    %v379 = vadd.f32 0.0, %v378
    %v380 = vpop.f32.mrb[0].mxu0
    %v381 = vadd.f32 0.0, %v380
    %382 = vmatprep.mubr.bf16.mxu0 0
    %383 = vmatmul.mubr.bf16.gmra.mrb[0].mxu0 %v282
    %v384 = vpop.f32.mrb[0].mxu0
    %v385 = vadd.f32 0.0, %v384
    %v386 = vpop.f32.mrb[0].mxu0
    %v387 = vadd.f32 0.0, %v386
    %v388 = vpop.f32.mrb[0].mxu0
    %v389 = vadd.f32 0.0, %v388
    %v390 = vpop.f32.mrb[0].mxu0
    %v391 = vadd.f32 0.0, %v390
    %392 = vmatprep.mubr.bf16.mxu0 0
    %393 = vmatmul.mubr.bf16.gmra.mrb[0].mxu0 %v285
    %v394 = vpop.f32.mrb[0].mxu0
    %v395 = vadd.f32 0.0, %v394
    %v396 = vpop.f32.mrb[0].mxu0
    %v397 = vadd.f32 0.0, %v396
    %v398 = vpop.f32.mrb[0].mxu0
    %v399 = vadd.f32 0.0, %v398
    %v400 = vpop.f32.mrb[0].mxu0
    %v401 = vadd.f32 0.0, %v400
    %402 = vmatprep.mubr.bf16.mxu0 0
    %403 = vmatmul.mubr.bf16.gmra.mrb[0].mxu0 %v288
    %v404 = vpop.f32.mrb[0].mxu0
    %v405 = vadd.f32 0.0, %v404
    %v406 = vpop.f32.mrb[0].mxu0
    %v407 = vadd.f32 0.0, %v406
    %v408 = vpop.f32.mrb[0].mxu0
    %v409 = vadd.f32 0.0, %v408
    %v410 = vpop.f32.mrb[0].mxu0
    %v411 = vadd.f32 0.0, %v410
    %412 = vmatprep.mubr.bf16.mxu0 0
    %413 = vmatmul.mubr.bf16.gmra.mrb[0].mxu0 %v291
    %v414 = vpop.f32.mrb[0].mxu0
    %v415 = vadd.f32 0.0, %v414
    %v416 = vpop.f32.mrb[0].mxu0
    %v417 = vadd.f32 0.0, %v416
    %v418 = vpop.f32.mrb[0].mxu0
    %v419 = vadd.f32 0.0, %v418
    %v420 = vpop.f32.mrb[0].mxu0
    %v421 = vadd.f32 0.0, %v420
    %422 = vmatprep.mubr.bf16.mxu0 0
    %423 = vmatmul.mubr.bf16.gmra.mrb[0].mxu0 %v294
    %v424 = vpop.f32.mrb[0].mxu0
    %v425 = vadd.f32 0.0, %v424
    %v426 = vpop.f32.mrb[0].mxu0
    %v427 = vadd.f32 0.0, %v426
    %v428 = vpop.f32.mrb[0].mxu0
    %v429 = vadd.f32 0.0, %v428
    %v430 = vpop.f32.mrb[0].mxu0
    %v431 = vadd.f32 0.0, %v430
    %432 = vmatprep.mubr.bf16.mxu0 0
    %433 = vmatmul.mubr.bf16.gmra.mrb[0].mxu0 %v297
    %v434 = vpop.f32.mrb[0].mxu0
    %v435 = vadd.f32 0.0, %v434
    %v436 = vpop.f32.mrb[0].mxu0
    %v437 = vadd.f32 0.0, %v436
    %v438 = vpop.f32.mrb[0].mxu0
    %v439 = vadd.f32 0.0, %v438
    %v440 = vpop.f32.mrb[0].mxu0
    %v441 = vadd.f32 0.0, %v440
    %442 = vmatprep.mubr.bf16.mxu0 0
    %443 = vmatmul.mubr.bf16.gmra.mrb[0].mxu0 %v300
    %v444 = vpop.f32.mrb[0].mxu0
    %v445 = vadd.f32 0.0, %v444
    %v446 = vpop.f32.mrb[0].mxu0
    %v447 = vadd.f32 0.0, %v446
    %v448 = vpop.f32.mrb[0].mxu0
    %v449 = vadd.f32 0.0, %v448
    %v450 = vpop.f32.mrb[0].mxu0
    %v451 = vadd.f32 0.0, %v450
    %452 = vmatprep.mubr.bf16.mxu0 0
    %453 = vmatmul.mubr.bf16.gmra.mrb[0].mxu0 %v303
    %v454 = vpop.f32.mrb[0].mxu0
    %v455 = vadd.f32 0.0, %v454
    %v456 = vpop.f32.mrb[0].mxu0
    %v457 = vadd.f32 0.0, %v456
    %v458 = vpop.f32.mrb[0].mxu0
    %v459 = vadd.f32 0.0, %v458
    %v460 = vpop.f32.mrb[0].mxu0
    %v461 = vadd.f32 0.0, %v460
    %462 = vmatprep.mubr.bf16.mxu0 0
    %463 = vmatmul.mubr.bf16.gmra.mrb[0].mxu0 %v306
    %v464 = vpop.f32.mrb[0].mxu0
    %v465 = vadd.f32 0.0, %v464
    %v466 = vpop.f32.mrb[0].mxu0
    %v467 = vadd.f32 0.0, %v466
    %v468 = vpop.f32.mrb[0].mxu0
    %v469 = vadd.f32 0.0, %v468
    %v470 = vpop.f32.mrb[0].mxu0
    %v471 = vadd.f32 0.0, %v470
    %472 = vmatprep.mubr.bf16.mxu0 0
    %473 = vmatmul.mubr.bf16.gmra.mrb[0].mxu0 %v309
    %v474 = vpop.f32.mrb[0].mxu0
    %v475 = vadd.f32 0.0, %v474
    %v476 = vpop.f32.mrb[0].mxu0
    %v477 = vadd.f32 0.0, %v476
    %v478 = vpop.f32.mrb[0].mxu0
    %v479 = vadd.f32 0.0, %v478
    %v480 = vpop.f32.mrb[0].mxu0
    %v481 = vadd.f32 0.0, %v480
    %482 = vmatprep.mubr.bf16.mxu0 0
    %483 = vmatmul.mubr.bf16.gmra.mrb[0].mxu0 %v312
    %v484 = vpop.f32.mrb[0].mxu0
    %v485 = vadd.f32 0.0, %v484
    %v486 = vpop.f32.mrb[0].mxu0
    %v487 = vadd.f32 0.0, %v486
    %v488 = vpop.f32.mrb[0].mxu0
    %v489 = vadd.f32 0.0, %v488
    %v490 = vpop.f32.mrb[0].mxu0
    %v491 = vadd.f32 0.0, %v490
    %492 = vmatprep.mubr.bf16.mxu0 0
    %493 = vmatmul.mubr.bf16.gmra.mrb[0].mxu0 %v315
    %v494 = vpop.f32.mrb[0].mxu0
    %v495 = vadd.f32 0.0, %v494
    %v496 = vpop.f32.mrb[0].mxu0
    %v497 = vadd.f32 0.0, %v496
    %v498 = vpop.f32.mrb[0].mxu0
    %v499 = vadd.f32 0.0, %v498
    %v500 = vpop.f32.mrb[0].mxu0
    %v501 = vadd.f32 0.0, %v500
    %502 = vmatprep.mubr.bf16.mxu0 0
    %503 = vmatmul.mubr.bf16.gmra.mrb[0].mxu0 %v318
    %v504 = vpop.f32.mrb[0].mxu0
    %v505 = vadd.f32 0.0, %v504
    %v506 = vpop.f32.mrb[0].mxu0
    %v507 = vadd.f32 0.0, %v506
    %v508 = vpop.f32.mrb[0].mxu0
    %v509 = vadd.f32 0.0, %v508
    %v510 = vpop.f32.mrb[0].mxu0
    %v511 = vadd.f32 0.0, %v510
    %512 = vdwg.mxu0
    %513 = vmatprep.subr.bf16.mxu0 %v258
    %514 = vmatpush1.bf16.msra.mxu0 %v257
    %515 = vmatprep.subr.bf16.mxu0 %v262
    %516 = vmatpush1.bf16.msra.mxu0 %v261
    %517 = vmatprep.subr.bf16.mxu0 0
    %518 = vmatpush1.bf16.msra.mxu0 0
    %519 = vmatprep.subr.bf16.mxu0 0
    %520 = vmatpush1.bf16.msra.mxu0 0
    %521 = vmatprep.subr.bf16.mxu0 0
    %522 = vmatpush1.bf16.msra.mxu0 0
    %523 = vmatprep.subr.bf16.mxu0 0
    %524 = vmatpush1.bf16.msra.mxu0 0
    %525 = vmatprep.subr.bf16.mxu0 0
    %526 = vmatpush1.bf16.msra.mxu0 0
    %527 = vmatprep.subr.bf16.mxu0 0
    %528 = vmatpush1.bf16.msra.mxu0 0
    %529 = vmatprep.subr.bf16.mxu0 0
    %530 = vmatpush1.bf16.msra.mxu0 0
    %531 = vmatprep.subr.bf16.mxu0 0
    %532 = vmatpush1.bf16.msra.mxu0 0
    %533 = vmatprep.subr.bf16.mxu0 0
    %534 = vmatpush1.bf16.msra.mxu0 0
    %535 = vmatprep.subr.bf16.mxu0 0
    %536 = vmatpush1.bf16.msra.mxu0 0
    %537 = vmatprep.subr.bf16.mxu0 0
    %538 = vmatpush1.bf16.msra.mxu0 0
    %539 = vmatprep.subr.bf16.mxu0 0
    %540 = vmatpush1.bf16.msra.mxu0 0
    %541 = vmatprep.subr.bf16.mxu0 0
    %542 = vmatpush1.bf16.msra.mxu0 0
    %543 = vmatprep.subr.bf16.mxu0 0
    %544 = vmatpush1.bf16.msra.mxu0 0
    %545 = vmatprep.mubr.bf16.mxu0 0
    %546 = vmatmul.mubr.bf16.gmra.mrb[0].mxu0 %v273
    %v547 = vpop.f32.mrb[0].mxu0
    %v548 = vadd.f32 0.0, %v547
    %v549 = vpop.f32.mrb[0].mxu0
    %v550 = vadd.f32 0.0, %v549
    %v551 = vpop.f32.mrb[0].mxu0
    %v552 = vadd.f32 0.0, %v551
    %v553 = vpop.f32.mrb[0].mxu0
    %v554 = vadd.f32 0.0, %v553
    %555 = vmatprep.mubr.bf16.mxu0 0
    %556 = vmatmul.mubr.bf16.gmra.mrb[0].mxu0 %v276
    %v557 = vpop.f32.mrb[0].mxu0
    %v558 = vadd.f32 0.0, %v557
    %v559 = vpop.f32.mrb[0].mxu0
    %v560 = vadd.f32 0.0, %v559
    %v561 = vpop.f32.mrb[0].mxu0
    %v562 = vadd.f32 0.0, %v561
    %v563 = vpop.f32.mrb[0].mxu0
    %v564 = vadd.f32 0.0, %v563
    %565 = vmatprep.mubr.bf16.mxu0 0
    %566 = vmatmul.mubr.bf16.gmra.mrb[0].mxu0 %v279
    %v567 = vpop.f32.mrb[0].mxu0
    %v568 = vadd.f32 0.0, %v567
    %v569 = vpop.f32.mrb[0].mxu0
    %v570 = vadd.f32 0.0, %v569
    %v571 = vpop.f32.mrb[0].mxu0
    %v572 = vadd.f32 0.0, %v571
    %v573 = vpop.f32.mrb[0].mxu0
    %v574 = vadd.f32 0.0, %v573
    %575 = vmatprep.mubr.bf16.mxu0 0
    %576 = vmatmul.mubr.bf16.gmra.mrb[0].mxu0 %v282
    %v577 = vpop.f32.mrb[0].mxu0
    %v578 = vadd.f32 0.0, %v577
    %v579 = vpop.f32.mrb[0].mxu0
    %v580 = vadd.f32 0.0, %v579
    %v581 = vpop.f32.mrb[0].mxu0
    %v582 = vadd.f32 0.0, %v581
    %v583 = vpop.f32.mrb[0].mxu0
    %v584 = vadd.f32 0.0, %v583
    %585 = vmatprep.mubr.bf16.mxu0 0
    %586 = vmatmul.mubr.bf16.gmra.mrb[0].mxu0 %v285
    %v587 = vpop.f32.mrb[0].mxu0
    %v588 = vadd.f32 0.0, %v587
    %v589 = vpop.f32.mrb[0].mxu0
    %v590 = vadd.f32 0.0, %v589
    %v591 = vpop.f32.mrb[0].mxu0
    %v592 = vadd.f32 0.0, %v591
    %v593 = vpop.f32.mrb[0].mxu0
    %v594 = vadd.f32 0.0, %v593
    %595 = vmatprep.mubr.bf16.mxu0 0
    %596 = vmatmul.mubr.bf16.gmra.mrb[0].mxu0 %v288
    %v597 = vpop.f32.mrb[0].mxu0
    %v598 = vadd.f32 0.0, %v597
    %v599 = vpop.f32.mrb[0].mxu0
    %v600 = vadd.f32 0.0, %v599
    %v601 = vpop.f32.mrb[0].mxu0
    %v602 = vadd.f32 0.0, %v601
    %v603 = vpop.f32.mrb[0].mxu0
    %v604 = vadd.f32 0.0, %v603
    %605 = vmatprep.mubr.bf16.mxu0 0
    %606 = vmatmul.mubr.bf16.gmra.mrb[0].mxu0 %v291
    %v607 = vpop.f32.mrb[0].mxu0
    %v608 = vadd.f32 0.0, %v607
    %v609 = vpop.f32.mrb[0].mxu0
    %v610 = vadd.f32 0.0, %v609
    %v611 = vpop.f32.mrb[0].mxu0
    %v612 = vadd.f32 0.0, %v611
    %v613 = vpop.f32.mrb[0].mxu0
    %v614 = vadd.f32 0.0, %v613
    %615 = vmatprep.mubr.bf16.mxu0 0
    %616 = vmatmul.mubr.bf16.gmra.mrb[0].mxu0 %v294
    %v617 = vpop.f32.mrb[0].mxu0
    %v618 = vadd.f32 0.0, %v617
    %v619 = vpop.f32.mrb[0].mxu0
    %v620 = vadd.f32 0.0, %v619
    %v621 = vpop.f32.mrb[0].mxu0
    %v622 = vadd.f32 0.0, %v621
    %v623 = vpop.f32.mrb[0].mxu0
    %v624 = vadd.f32 0.0, %v623
    %625 = vmatprep.mubr.bf16.mxu0 0
    %626 = vmatmul.mubr.bf16.gmra.mrb[0].mxu0 %v297
    %v627 = vpop.f32.mrb[0].mxu0
    %v628 = vadd.f32 0.0, %v627
    %v629 = vpop.f32.mrb[0].mxu0
    %v630 = vadd.f32 0.0, %v629
    %v631 = vpop.f32.mrb[0].mxu0
    %v632 = vadd.f32 0.0, %v631
    %v633 = vpop.f32.mrb[0].mxu0
    %v634 = vadd.f32 0.0, %v633
    %635 = vmatprep.mubr.bf16.mxu0 0
    %636 = vmatmul.mubr.bf16.gmra.mrb[0].mxu0 %v300
    %v637 = vpop.f32.mrb[0].mxu0
    %v638 = vadd.f32 0.0, %v637
    %v639 = vpop.f32.mrb[0].mxu0
    %v640 = vadd.f32 0.0, %v639
    %v641 = vpop.f32.mrb[0].mxu0
    %v642 = vadd.f32 0.0, %v641
    %v643 = vpop.f32.mrb[0].mxu0
    %v644 = vadd.f32 0.0, %v643
    %645 = vmatprep.mubr.bf16.mxu0 0
    %646 = vmatmul.mubr.bf16.gmra.mrb[0].mxu0 %v303
    %v647 = vpop.f32.mrb[0].mxu0
    %v648 = vadd.f32 0.0, %v647
    %v649 = vpop.f32.mrb[0].mxu0
    %v650 = vadd.f32 0.0, %v649
    %v651 = vpop.f32.mrb[0].mxu0
    %v652 = vadd.f32 0.0, %v651
    %v653 = vpop.f32.mrb[0].mxu0
    %v654 = vadd.f32 0.0, %v653
    %655 = vmatprep.mubr.bf16.mxu0 0
    %656 = vmatmul.mubr.bf16.gmra.mrb[0].mxu0 %v306
    %v657 = vpop.f32.mrb[0].mxu0
    %v658 = vadd.f32 0.0, %v657
    %v659 = vpop.f32.mrb[0].mxu0
    %v660 = vadd.f32 0.0, %v659
    %v661 = vpop.f32.mrb[0].mxu0
    %v662 = vadd.f32 0.0, %v661
    %v663 = vpop.f32.mrb[0].mxu0
    %v664 = vadd.f32 0.0, %v663
    %665 = vmatprep.mubr.bf16.mxu0 0
    %666 = vmatmul.mubr.bf16.gmra.mrb[0].mxu0 %v309
    %v667 = vpop.f32.mrb[0].mxu0
    %v668 = vadd.f32 0.0, %v667
    %v669 = vpop.f32.mrb[0].mxu0
    %v670 = vadd.f32 0.0, %v669
    %v671 = vpop.f32.mrb[0].mxu0
    %v672 = vadd.f32 0.0, %v671
    %v673 = vpop.f32.mrb[0].mxu0
    %v674 = vadd.f32 0.0, %v673
    %675 = vmatprep.mubr.bf16.mxu0 0
    %676 = vmatmul.mubr.bf16.gmra.mrb[0].mxu0 %v312
    %v677 = vpop.f32.mrb[0].mxu0
    %v678 = vadd.f32 0.0, %v677
    %v679 = vpop.f32.mrb[0].mxu0
    %v680 = vadd.f32 0.0, %v679
    %v681 = vpop.f32.mrb[0].mxu0
    %v682 = vadd.f32 0.0, %v681
    %v683 = vpop.f32.mrb[0].mxu0
    %v684 = vadd.f32 0.0, %v683
    %685 = vmatprep.mubr.bf16.mxu0 0
    %686 = vmatmul.mubr.bf16.gmra.mrb[0].mxu0 %v315
    %v687 = vpop.f32.mrb[0].mxu0
    %v688 = vadd.f32 0.0, %v687
    %v689 = vpop.f32.mrb[0].mxu0
    %v690 = vadd.f32 0.0, %v689
    %v691 = vpop.f32.mrb[0].mxu0
    %v692 = vadd.f32 0.0, %v691
    %v693 = vpop.f32.mrb[0].mxu0
    %v694 = vadd.f32 0.0, %v693
    %695 = vmatprep.mubr.bf16.mxu0 0
    %696 = vmatmul.mubr.bf16.gmra.mrb[0].mxu0 %v318
    %v697 = vpop.f32.mrb[0].mxu0
    %v698 = vadd.f32 0.0, %v697
    %v699 = vpop.f32.mrb[0].mxu0
    %v700 = vadd.f32 0.0, %v699
    %v701 = vpop.f32.mrb[0].mxu0
    %v702 = vadd.f32 0.0, %v701
    %v703 = vpop.f32.mrb[0].mxu0
    %v704 = vadd.f32 0.0, %v703
    %705 = vdwg.mxu0
    %v706 = vpack.c.bf16 %v359, %v355
    %v707 = vpack.c.bf16 %v361, %v357
    %v708 = vpack.c.bf16 %v552, %v548
    %v709 = vpack.c.bf16 %v554, %v550
    %v710 = vpack.c.bf16 %v369, %v365
    %v711 = vpack.c.bf16 %v371, %v367
    %v712 = vpack.c.bf16 %v562, %v558
    %v713 = vpack.c.bf16 %v564, %v560
    %v714 = vpack.c.bf16 %v379, %v375
    %v715 = vpack.c.bf16 %v381, %v377
    %v716 = vpack.c.bf16 %v572, %v568
    %v717 = vpack.c.bf16 %v574, %v570
    %v718 = vpack.c.bf16 %v389, %v385
    %v719 = vpack.c.bf16 %v391, %v387
    %v720 = vpack.c.bf16 %v582, %v578
    %v721 = vpack.c.bf16 %v584, %v580
    %v722 = vpack.c.bf16 %v399, %v395
    %v723 = vpack.c.bf16 %v401, %v397
    %v724 = vpack.c.bf16 %v592, %v588
    %v725 = vpack.c.bf16 %v594, %v590
    %v726 = vpack.c.bf16 %v409, %v405
    %v727 = vpack.c.bf16 %v411, %v407
    %v728 = vpack.c.bf16 %v602, %v598
    %v729 = vpack.c.bf16 %v604, %v600
    %v730 = vpack.c.bf16 %v419, %v415
    %v731 = vpack.c.bf16 %v421, %v417
    %v732 = vpack.c.bf16 %v612, %v608
    %v733 = vpack.c.bf16 %v614, %v610
    %v734 = vpack.c.bf16 %v429, %v425
    %v735 = vpack.c.bf16 %v431, %v427
    %v736 = vpack.c.bf16 %v622, %v618
    %v737 = vpack.c.bf16 %v624, %v620
    %v738 = vpack.c.bf16 %v439, %v435
    %v739 = vpack.c.bf16 %v441, %v437
    %v740 = vpack.c.bf16 %v632, %v628
    %v741 = vpack.c.bf16 %v634, %v630
    %v742 = vpack.c.bf16 %v449, %v445
    %v743 = vpack.c.bf16 %v451, %v447
    %v744 = vpack.c.bf16 %v642, %v638
    %v745 = vpack.c.bf16 %v644, %v640
    %v746 = vpack.c.bf16 %v459, %v455
    %v747 = vpack.c.bf16 %v461, %v457
    %v748 = vpack.c.bf16 %v652, %v648
    %v749 = vpack.c.bf16 %v654, %v650
    %v750 = vpack.c.bf16 %v469, %v465
    %v751 = vpack.c.bf16 %v471, %v467
    %v752 = vpack.c.bf16 %v662, %v658
    %v753 = vpack.c.bf16 %v664, %v660
    %v754 = vpack.c.bf16 %v479, %v475
    %v755 = vpack.c.bf16 %v481, %v477
    %v756 = vpack.c.bf16 %v672, %v668
    %v757 = vpack.c.bf16 %v674, %v670
    %v758 = vpack.c.bf16 %v489, %v485
    %v759 = vpack.c.bf16 %v491, %v487
    %v760 = vpack.c.bf16 %v682, %v678
    %v761 = vpack.c.bf16 %v684, %v680
    %v762 = vpack.c.bf16 %v499, %v495
    %v763 = vpack.c.bf16 %v501, %v497
    %v764 = vpack.c.bf16 %v692, %v688
    %v765 = vpack.c.bf16 %v694, %v690
    %v766 = vpack.c.bf16 %v509, %v505
    %v767 = vpack.c.bf16 %v511, %v507
    %v768 = vpack.c.bf16 %v702, %v698
    %v769 = vpack.c.bf16 %v704, %v700
    %v771 = vlaneseq
    %v772 = vshrl.u32 %v771, 7
    %v773 = vsub.s32 0, %v772
    %v774 = vrot.slane %v83, %v773
    %v775 = vlaneseq
    %v776 = vshrl.u32 %v775, 7
    %v777 = vsub.s32 1, %v776
    %v778 = vrot.slane %v83, %v777
    %v779 = vlaneseq
    %v780 = vshrl.u32 %v779, 7
    %v781 = vsub.s32 2, %v780
    %v782 = vrot.slane %v83, %v781
    %v783 = vlaneseq
    %v784 = vshrl.u32 %v783, 7
    %v785 = vsub.s32 3, %v784
    %v786 = vrot.slane %v83, %v785
    %v791 = vpack.c.bf16 %v774, %v774
    %v792 = vpack.c.bf16 %v778, %v778
    %v793 = vpack.c.bf16 %v782, %v782
    %v794 = vpack.c.bf16 %v786, %v786
    %v796 = vpack.i.b16 %v791, %v791
    %v798 = vlaneseq
    %v799 = vshrl.u32 %v798, 7
    %v800 = vsub.s32 0, %v799
    %v801 = vrot.slane %v796, %v800
    %v803 = vpack.i.b16 %v792, %v792
    %v805 = vlaneseq
    %v806 = vshrl.u32 %v805, 7
    %v807 = vsub.s32 0, %v806
    %v808 = vrot.slane %v803, %v807
    %v810 = vpack.i.b16 %v793, %v793
    %v812 = vlaneseq
    %v813 = vshrl.u32 %v812, 7
    %v814 = vsub.s32 0, %v813
    %v815 = vrot.slane %v810, %v814
    %v817 = vpack.i.b16 %v794, %v794
    %v819 = vlaneseq
    %v820 = vshrl.u32 %v819, 7
    %v821 = vsub.s32 0, %v820
    %v822 = vrot.slane %v817, %v821
    %v823 = vadd.bf16 %v706, %v801
    %v824 = vadd.bf16 %v707, %v808
    %v825 = vadd.bf16 %v708, %v815
    %v826 = vadd.bf16 %v709, %v822
    %v827 = vadd.bf16 %v710, %v801
    %v828 = vadd.bf16 %v711, %v808
    %v829 = vadd.bf16 %v712, %v815
    %v830 = vadd.bf16 %v713, %v822
    %v831 = vadd.bf16 %v714, %v801
    %v832 = vadd.bf16 %v715, %v808
    %v833 = vadd.bf16 %v716, %v815
    %v834 = vadd.bf16 %v717, %v822
    %v835 = vadd.bf16 %v718, %v801
    %v836 = vadd.bf16 %v719, %v808
    %v837 = vadd.bf16 %v720, %v815
    %v838 = vadd.bf16 %v721, %v822
    %v839 = vadd.bf16 %v722, %v801
    %v840 = vadd.bf16 %v723, %v808
    %v841 = vadd.bf16 %v724, %v815
    %v842 = vadd.bf16 %v725, %v822
    %v843 = vadd.bf16 %v726, %v801
    %v844 = vadd.bf16 %v727, %v808
    %v845 = vadd.bf16 %v728, %v815
    %v846 = vadd.bf16 %v729, %v822
    %v847 = vadd.bf16 %v730, %v801
    %v848 = vadd.bf16 %v731, %v808
    %v849 = vadd.bf16 %v732, %v815
    %v850 = vadd.bf16 %v733, %v822
    %v851 = vadd.bf16 %v734, %v801
    %v852 = vadd.bf16 %v735, %v808
    %v853 = vadd.bf16 %v736, %v815
    %v854 = vadd.bf16 %v737, %v822
    %v855 = vadd.bf16 %v738, %v801
    %v856 = vadd.bf16 %v739, %v808
    %v857 = vadd.bf16 %v740, %v815
    %v858 = vadd.bf16 %v741, %v822
    %v859 = vadd.bf16 %v742, %v801
    %v860 = vadd.bf16 %v743, %v808
    %v861 = vadd.bf16 %v744, %v815
    %v862 = vadd.bf16 %v745, %v822
    %v863 = vadd.bf16 %v746, %v801
    %v864 = vadd.bf16 %v747, %v808
    %v865 = vadd.bf16 %v748, %v815
    %v866 = vadd.bf16 %v749, %v822
    %v867 = vadd.bf16 %v750, %v801
    %v868 = vadd.bf16 %v751, %v808
    %v869 = vadd.bf16 %v752, %v815
    %v870 = vadd.bf16 %v753, %v822
    %v871 = vadd.bf16 %v754, %v801
    %v872 = vadd.bf16 %v755, %v808
    %v873 = vadd.bf16 %v756, %v815
    %v874 = vadd.bf16 %v757, %v822
    %v875 = vadd.bf16 %v758, %v801
    %v876 = vadd.bf16 %v759, %v808
    %v877 = vadd.bf16 %v760, %v815
    %v878 = vadd.bf16 %v761, %v822
    %v879 = vadd.bf16 %v762, %v801
    %v880 = vadd.bf16 %v763, %v808
    %v881 = vadd.bf16 %v764, %v815
    %v882 = vadd.bf16 %v765, %v822
    %v883 = vadd.bf16 %v766, %v801
    %v884 = vadd.bf16 %v767, %v808
    %v885 = vadd.bf16 %v768, %v815
    %v886 = vadd.bf16 %v769, %v822
    %v887 = vmul.bf16 %v823, 1028472141
    %v888 = vmul.bf16 %v824, 1028472141
    %v889 = vmul.bf16 %v825, 1028472141
    %v890 = vmul.bf16 %v826, 1028472141
    %v891 = vmul.bf16 %v827, 1028472141
    %v892 = vmul.bf16 %v828, 1028472141
    %v893 = vmul.bf16 %v829, 1028472141
    %v894 = vmul.bf16 %v830, 1028472141
    %v895 = vmul.bf16 %v831, 1028472141
    %v896 = vmul.bf16 %v832, 1028472141
    %v897 = vmul.bf16 %v833, 1028472141
    %v898 = vmul.bf16 %v834, 1028472141
    %v899 = vmul.bf16 %v835, 1028472141
    %v900 = vmul.bf16 %v836, 1028472141
    %v901 = vmul.bf16 %v837, 1028472141
    %v902 = vmul.bf16 %v838, 1028472141
    %v903 = vmul.bf16 %v839, 1028472141
    %v904 = vmul.bf16 %v840, 1028472141
    %v905 = vmul.bf16 %v841, 1028472141
    %v906 = vmul.bf16 %v842, 1028472141
    %v907 = vmul.bf16 %v843, 1028472141
    %v908 = vmul.bf16 %v844, 1028472141
    %v909 = vmul.bf16 %v845, 1028472141
    %v910 = vmul.bf16 %v846, 1028472141
    %v911 = vmul.bf16 %v847, 1028472141
    %v912 = vmul.bf16 %v848, 1028472141
    %v913 = vmul.bf16 %v849, 1028472141
    %v914 = vmul.bf16 %v850, 1028472141
    %v915 = vmul.bf16 %v851, 1028472141
    %v916 = vmul.bf16 %v852, 1028472141
    %v917 = vmul.bf16 %v853, 1028472141
    %v918 = vmul.bf16 %v854, 1028472141
    %v919 = vmul.bf16 %v855, 1028472141
    %v920 = vmul.bf16 %v856, 1028472141
    %v921 = vmul.bf16 %v857, 1028472141
    %v922 = vmul.bf16 %v858, 1028472141
    %v923 = vmul.bf16 %v859, 1028472141
    %v924 = vmul.bf16 %v860, 1028472141
    %v925 = vmul.bf16 %v861, 1028472141
    %v926 = vmul.bf16 %v862, 1028472141
    %v927 = vmul.bf16 %v863, 1028472141
    %v928 = vmul.bf16 %v864, 1028472141
    %v929 = vmul.bf16 %v865, 1028472141
    %v930 = vmul.bf16 %v866, 1028472141
    %v931 = vmul.bf16 %v867, 1028472141
    %v932 = vmul.bf16 %v868, 1028472141
    %v933 = vmul.bf16 %v869, 1028472141
    %v934 = vmul.bf16 %v870, 1028472141
    %v935 = vmul.bf16 %v871, 1028472141
    %v936 = vmul.bf16 %v872, 1028472141
    %v937 = vmul.bf16 %v873, 1028472141
    %v938 = vmul.bf16 %v874, 1028472141
    %v939 = vmul.bf16 %v875, 1028472141
    %v940 = vmul.bf16 %v876, 1028472141
    %v941 = vmul.bf16 %v877, 1028472141
    %v942 = vmul.bf16 %v878, 1028472141
    %v943 = vmul.bf16 %v879, 1028472141
    %v944 = vmul.bf16 %v880, 1028472141
    %v945 = vmul.bf16 %v881, 1028472141
    %v946 = vmul.bf16 %v882, 1028472141
    %v947 = vmul.bf16 %v883, 1028472141
    %v948 = vmul.bf16 %v884, 1028472141
    %v949 = vmul.bf16 %v885, 1028472141
    %v950 = vmul.bf16 %v886, 1028472141
    %v951 = vmax.bf16 %v823, %v887
    %v952 = vmax.bf16 %v824, %v888
    %v953 = vmax.bf16 %v825, %v889
    %v954 = vmax.bf16 %v826, %v890
    %v955 = vmax.bf16 %v827, %v891
    %v956 = vmax.bf16 %v828, %v892
    %v957 = vmax.bf16 %v829, %v893
    %v958 = vmax.bf16 %v830, %v894
    %v959 = vmax.bf16 %v831, %v895
    %v960 = vmax.bf16 %v832, %v896
    %v961 = vmax.bf16 %v833, %v897
    %v962 = vmax.bf16 %v834, %v898
    %v963 = vmax.bf16 %v835, %v899
    %v964 = vmax.bf16 %v836, %v900
    %v965 = vmax.bf16 %v837, %v901
    %v966 = vmax.bf16 %v838, %v902
    %v967 = vmax.bf16 %v839, %v903
    %v968 = vmax.bf16 %v840, %v904
    %v969 = vmax.bf16 %v841, %v905
    %v970 = vmax.bf16 %v842, %v906
    %v971 = vmax.bf16 %v843, %v907
    %v972 = vmax.bf16 %v844, %v908
    %v973 = vmax.bf16 %v845, %v909
    %v974 = vmax.bf16 %v846, %v910
    %v975 = vmax.bf16 %v847, %v911
    %v976 = vmax.bf16 %v848, %v912
    %v977 = vmax.bf16 %v849, %v913
    %v978 = vmax.bf16 %v850, %v914
    %v979 = vmax.bf16 %v851, %v915
    %v980 = vmax.bf16 %v852, %v916
    %v981 = vmax.bf16 %v853, %v917
    %v982 = vmax.bf16 %v854, %v918
    %v983 = vmax.bf16 %v855, %v919
    %v984 = vmax.bf16 %v856, %v920
    %v985 = vmax.bf16 %v857, %v921
    %v986 = vmax.bf16 %v858, %v922
    %v987 = vmax.bf16 %v859, %v923
    %v988 = vmax.bf16 %v860, %v924
    %v989 = vmax.bf16 %v861, %v925
    %v990 = vmax.bf16 %v862, %v926
    %v991 = vmax.bf16 %v863, %v927
    %v992 = vmax.bf16 %v864, %v928
    %v993 = vmax.bf16 %v865, %v929
    %v994 = vmax.bf16 %v866, %v930
    %v995 = vmax.bf16 %v867, %v931
    %v996 = vmax.bf16 %v868, %v932
    %v997 = vmax.bf16 %v869, %v933
    %v998 = vmax.bf16 %v870, %v934
    %v999 = vmax.bf16 %v871, %v935
    %v1000 = vmax.bf16 %v872, %v936
    %v1001 = vmax.bf16 %v873, %v937
    %v1002 = vmax.bf16 %v874, %v938
    %v1003 = vmax.bf16 %v875, %v939
    %v1004 = vmax.bf16 %v876, %v940
    %v1005 = vmax.bf16 %v877, %v941
    %v1006 = vmax.bf16 %v878, %v942
    %v1007 = vmax.bf16 %v879, %v943
    %v1008 = vmax.bf16 %v880, %v944
    %v1009 = vmax.bf16 %v881, %v945
    %v1010 = vmax.bf16 %v882, %v946
    %v1011 = vmax.bf16 %v883, %v947
    %v1012 = vmax.bf16 %v884, %v948
    %v1013 = vmax.bf16 %v885, %v949
    %v1014 = vmax.bf16 %v886, %v950
    %v1143 = vunpack.c.l.b16 %v84
    %v1144 = vunpack.c.h.b16 %v84
    %v1145 = vunpack.c.l.b16 %v85
    %v1146 = vunpack.c.h.b16 %v85
    %v1147 = vunpack.c.l.b16 %v86
    %v1148 = vunpack.c.h.b16 %v86
    %v1149 = vunpack.c.l.b16 %v87
    %v1150 = vunpack.c.h.b16 %v87
    %v1151 = vunpack.c.l.b16 %v88
    %v1152 = vunpack.c.h.b16 %v88
    %v1153 = vunpack.c.l.b16 %v89
    %v1154 = vunpack.c.h.b16 %v89
    %v1155 = vunpack.c.l.b16 %v90
    %v1156 = vunpack.c.h.b16 %v90
    %v1157 = vunpack.c.l.b16 %v91
    %v1158 = vunpack.c.h.b16 %v91
    %v1159 = vunpack.c.l.b16 %v92
    %v1160 = vunpack.c.h.b16 %v92
    %v1161 = vunpack.c.l.b16 %v93
    %v1162 = vunpack.c.h.b16 %v93
    %v1163 = vunpack.c.l.b16 %v94
    %v1164 = vunpack.c.h.b16 %v94
    %v1165 = vunpack.c.l.b16 %v95
    %v1166 = vunpack.c.h.b16 %v95
    %v1167 = vunpack.c.l.b16 %v96
    %v1168 = vunpack.c.h.b16 %v96
    %v1169 = vunpack.c.l.b16 %v97
    %v1170 = vunpack.c.h.b16 %v97
    %v1171 = vunpack.c.l.b16 %v98
    %v1172 = vunpack.c.h.b16 %v98
    %v1173 = vunpack.c.l.b16 %v99
    %v1174 = vunpack.c.h.b16 %v99
    %v1175 = vunpack.c.l.b16 %v100
    %v1176 = vunpack.c.h.b16 %v100
    %v1177 = vunpack.c.l.b16 %v101
    %v1178 = vunpack.c.h.b16 %v101
    %v1179 = vunpack.c.l.b16 %v102
    %v1180 = vunpack.c.h.b16 %v102
    %v1181 = vunpack.c.l.b16 %v103
    %v1182 = vunpack.c.h.b16 %v103
    %v1183 = vunpack.c.l.b16 %v104
    %v1184 = vunpack.c.h.b16 %v104
    %v1185 = vunpack.c.l.b16 %v105
    %v1186 = vunpack.c.h.b16 %v105
    %v1187 = vunpack.c.l.b16 %v106
    %v1188 = vunpack.c.h.b16 %v106
    %v1189 = vunpack.c.l.b16 %v107
    %v1190 = vunpack.c.h.b16 %v107
    %v1191 = vunpack.c.l.b16 %v108
    %v1192 = vunpack.c.h.b16 %v108
    %v1193 = vunpack.c.l.b16 %v109
    %v1194 = vunpack.c.h.b16 %v109
    %v1195 = vunpack.c.l.b16 %v110
    %v1196 = vunpack.c.h.b16 %v110
    %v1197 = vunpack.c.l.b16 %v111
    %v1198 = vunpack.c.h.b16 %v111
    %v1199 = vunpack.c.l.b16 %v112
    %v1200 = vunpack.c.h.b16 %v112
    %v1201 = vunpack.c.l.b16 %v113
    %v1202 = vunpack.c.h.b16 %v113
    %v1203 = vunpack.c.l.b16 %v114
    %v1204 = vunpack.c.h.b16 %v114
    %v1205 = vunpack.c.l.b16 %v115
    %v1206 = vunpack.c.h.b16 %v115
    %v1207 = vunpack.c.l.b16 %v116
    %v1208 = vunpack.c.h.b16 %v116
    %v1209 = vunpack.c.l.b16 %v117
    %v1210 = vunpack.c.h.b16 %v117
    %v1211 = vunpack.c.l.b16 %v118
    %v1212 = vunpack.c.h.b16 %v118
    %v1213 = vunpack.c.l.b16 %v119
    %v1214 = vunpack.c.h.b16 %v119
    %v1215 = vunpack.c.l.b16 %v120
    %v1216 = vunpack.c.h.b16 %v120
    %v1217 = vunpack.c.l.b16 %v121
    %v1218 = vunpack.c.h.b16 %v121
    %v1219 = vunpack.c.l.b16 %v122
    %v1220 = vunpack.c.h.b16 %v122
    %v1221 = vunpack.c.l.b16 %v123
    %v1222 = vunpack.c.h.b16 %v123
    %v1223 = vunpack.c.l.b16 %v124
    %v1224 = vunpack.c.h.b16 %v124
    %v1225 = vunpack.c.l.b16 %v125
    %v1226 = vunpack.c.h.b16 %v125
    %v1227 = vunpack.c.l.b16 %v126
    %v1228 = vunpack.c.h.b16 %v126
    %v1229 = vunpack.c.l.b16 %v127
    %v1230 = vunpack.c.h.b16 %v127
    %v1231 = vunpack.c.l.b16 %v128
    %v1232 = vunpack.c.h.b16 %v128
    %v1233 = vunpack.c.l.b16 %v129
    %v1234 = vunpack.c.h.b16 %v129
    %v1235 = vunpack.c.l.b16 %v130
    %v1236 = vunpack.c.h.b16 %v130
    %v1237 = vunpack.c.l.b16 %v131
    %v1238 = vunpack.c.h.b16 %v131
    %v1239 = vunpack.c.l.b16 %v132
    %v1240 = vunpack.c.h.b16 %v132
    %v1241 = vunpack.c.l.b16 %v133
    %v1242 = vunpack.c.h.b16 %v133
    %v1243 = vunpack.c.l.b16 %v134
    %v1244 = vunpack.c.h.b16 %v134
    %v1245 = vunpack.c.l.b16 %v135
    %v1246 = vunpack.c.h.b16 %v135
    %v1247 = vunpack.c.l.b16 %v136
    %v1248 = vunpack.c.h.b16 %v136
    %v1249 = vunpack.c.l.b16 %v137
    %v1250 = vunpack.c.h.b16 %v137
    %v1251 = vunpack.c.l.b16 %v138
    %v1252 = vunpack.c.h.b16 %v138
    %v1253 = vunpack.c.l.b16 %v139
    %v1254 = vunpack.c.h.b16 %v139
    %v1255 = vunpack.c.l.b16 %v140
    %v1256 = vunpack.c.h.b16 %v140
    %v1257 = vunpack.c.l.b16 %v141
    %v1258 = vunpack.c.h.b16 %v141
    %v1259 = vunpack.c.l.b16 %v142
    %v1260 = vunpack.c.h.b16 %v142
    %v1261 = vunpack.c.l.b16 %v143
    %v1262 = vunpack.c.h.b16 %v143
    %v1263 = vunpack.c.l.b16 %v144
    %v1264 = vunpack.c.h.b16 %v144
    %v1265 = vunpack.c.l.b16 %v145
    %v1266 = vunpack.c.h.b16 %v145
    %v1267 = vunpack.c.l.b16 %v146
    %v1268 = vunpack.c.h.b16 %v146
    %v1269 = vunpack.c.l.b16 %v147
    %v1270 = vunpack.c.h.b16 %v147
    %v1271 = vunpack.c.l.b16 %v148
    %v1272 = vunpack.c.h.b16 %v148
    %v1273 = vunpack.c.l.b16 %v149
    %v1274 = vunpack.c.h.b16 %v149
    %v1275 = vunpack.c.l.b16 %v150
    %v1276 = vunpack.c.h.b16 %v150
    %v1277 = vunpack.c.l.b16 %v151
    %v1278 = vunpack.c.h.b16 %v151
    %v1279 = vunpack.c.l.b16 %v152
    %v1280 = vunpack.c.h.b16 %v152
    %v1281 = vunpack.c.l.b16 %v153
    %v1282 = vunpack.c.h.b16 %v153
    %v1283 = vunpack.c.l.b16 %v154
    %v1284 = vunpack.c.h.b16 %v154
    %v1285 = vunpack.c.l.b16 %v155
    %v1286 = vunpack.c.h.b16 %v155
    %v1287 = vunpack.c.l.b16 %v156
    %v1288 = vunpack.c.h.b16 %v156
    %v1289 = vunpack.c.l.b16 %v157
    %v1290 = vunpack.c.h.b16 %v157
    %v1291 = vunpack.c.l.b16 %v158
    %v1292 = vunpack.c.h.b16 %v158
    %v1293 = vunpack.c.l.b16 %v159
    %v1294 = vunpack.c.h.b16 %v159
    %v1295 = vunpack.c.l.b16 %v160
    %v1296 = vunpack.c.h.b16 %v160
    %v1297 = vunpack.c.l.b16 %v161
    %v1298 = vunpack.c.h.b16 %v161
    %v1299 = vunpack.c.l.b16 %v162
    %v1300 = vunpack.c.h.b16 %v162
    %v1301 = vunpack.c.l.b16 %v163
    %v1302 = vunpack.c.h.b16 %v163
    %v1303 = vunpack.c.l.b16 %v164
    %v1304 = vunpack.c.h.b16 %v164
    %v1305 = vunpack.c.l.b16 %v165
    %v1306 = vunpack.c.h.b16 %v165
    %v1307 = vunpack.c.l.b16 %v166
    %v1308 = vunpack.c.h.b16 %v166
    %v1309 = vunpack.c.l.b16 %v167
    %v1310 = vunpack.c.h.b16 %v167
    %v1311 = vunpack.c.l.b16 %v168
    %v1312 = vunpack.c.h.b16 %v168
    %v1313 = vunpack.c.l.b16 %v169
    %v1314 = vunpack.c.h.b16 %v169
    %v1315 = vunpack.c.l.b16 %v170
    %v1316 = vunpack.c.h.b16 %v170
    %v1317 = vunpack.c.l.b16 %v171
    %v1318 = vunpack.c.h.b16 %v171
    %v1319 = vunpack.c.l.b16 %v172
    %v1320 = vunpack.c.h.b16 %v172
    %v1321 = vunpack.c.l.b16 %v173
    %v1322 = vunpack.c.h.b16 %v173
    %v1323 = vunpack.c.l.b16 %v174
    %v1324 = vunpack.c.h.b16 %v174
    %v1325 = vunpack.c.l.b16 %v175
    %v1326 = vunpack.c.h.b16 %v175
    %v1327 = vunpack.c.l.b16 %v176
    %v1328 = vunpack.c.h.b16 %v176
    %v1329 = vunpack.c.l.b16 %v177
    %v1330 = vunpack.c.h.b16 %v177
    %v1331 = vunpack.c.l.b16 %v178
    %v1332 = vunpack.c.h.b16 %v178
    %v1333 = vunpack.c.l.b16 %v179
    %v1334 = vunpack.c.h.b16 %v179
    %v1335 = vunpack.c.l.b16 %v180
    %v1336 = vunpack.c.h.b16 %v180
    %v1337 = vunpack.c.l.b16 %v181
    %v1338 = vunpack.c.h.b16 %v181
    %v1339 = vunpack.c.l.b16 %v182
    %v1340 = vunpack.c.h.b16 %v182
    %v1341 = vunpack.c.l.b16 %v183
    %v1342 = vunpack.c.h.b16 %v183
    %v1343 = vunpack.c.l.b16 %v184
    %v1344 = vunpack.c.h.b16 %v184
    %v1345 = vunpack.c.l.b16 %v185
    %v1346 = vunpack.c.h.b16 %v185
    %v1347 = vunpack.c.l.b16 %v186
    %v1348 = vunpack.c.h.b16 %v186
    %v1349 = vunpack.c.l.b16 %v187
    %v1350 = vunpack.c.h.b16 %v187
    %v1351 = vunpack.c.l.b16 %v188
    %v1352 = vunpack.c.h.b16 %v188
    %v1353 = vunpack.c.l.b16 %v189
    %v1354 = vunpack.c.h.b16 %v189
    %v1355 = vunpack.c.l.b16 %v190
    %v1356 = vunpack.c.h.b16 %v190
    %v1357 = vunpack.c.l.b16 %v191
    %v1358 = vunpack.c.h.b16 %v191
    %v1359 = vunpack.c.l.b16 %v192
    %v1360 = vunpack.c.h.b16 %v192
    %v1361 = vunpack.c.l.b16 %v193
    %v1362 = vunpack.c.h.b16 %v193
    %v1363 = vunpack.c.l.b16 %v194
    %v1364 = vunpack.c.h.b16 %v194
    %v1365 = vunpack.c.l.b16 %v195
    %v1366 = vunpack.c.h.b16 %v195
    %v1367 = vunpack.c.l.b16 %v196
    %v1368 = vunpack.c.h.b16 %v196
    %v1369 = vunpack.c.l.b16 %v197
    %v1370 = vunpack.c.h.b16 %v197
    %v1371 = vunpack.c.l.b16 %v198
    %v1372 = vunpack.c.h.b16 %v198
    %v1373 = vunpack.c.l.b16 %v199
    %v1374 = vunpack.c.h.b16 %v199
    %v1375 = vunpack.c.l.b16 %v200
    %v1376 = vunpack.c.h.b16 %v200
    %v1377 = vunpack.c.l.b16 %v201
    %v1378 = vunpack.c.h.b16 %v201
    %v1379 = vunpack.c.l.b16 %v202
    %v1380 = vunpack.c.h.b16 %v202
    %v1381 = vunpack.c.l.b16 %v203
    %v1382 = vunpack.c.h.b16 %v203
    %v1383 = vunpack.c.l.b16 %v204
    %v1384 = vunpack.c.h.b16 %v204
    %v1385 = vunpack.c.l.b16 %v205
    %v1386 = vunpack.c.h.b16 %v205
    %v1387 = vunpack.c.l.b16 %v206
    %v1388 = vunpack.c.h.b16 %v206
    %v1389 = vunpack.c.l.b16 %v207
    %v1390 = vunpack.c.h.b16 %v207
    %v1391 = vunpack.c.l.b16 %v208
    %v1392 = vunpack.c.h.b16 %v208
    %v1393 = vunpack.c.l.b16 %v209
    %v1394 = vunpack.c.h.b16 %v209
    %v1395 = vunpack.c.l.b16 %v210
    %v1396 = vunpack.c.h.b16 %v210
    %v1397 = vunpack.c.l.b16 %v211
    %v1398 = vunpack.c.h.b16 %v211
    %v1399 = vpack.c.b16 %v1147, %v1143
    %v1400 = vpack.c.b16 %v1148, %v1144
    %v1401 = vpack.c.b16 %v1149, %v1145
    %v1402 = vpack.c.b16 %v1150, %v1146
    %v1403 = vpack.c.b16 %v1155, %v1151
    %v1404 = vpack.c.b16 %v1156, %v1152
    %v1405 = vpack.c.b16 %v1157, %v1153
    %v1406 = vpack.c.b16 %v1158, %v1154
    %v1407 = vpack.c.b16 %v1163, %v1159
    %v1408 = vpack.c.b16 %v1164, %v1160
    %v1409 = vpack.c.b16 %v1165, %v1161
    %v1410 = vpack.c.b16 %v1166, %v1162
    %v1411 = vpack.c.b16 %v1171, %v1167
    %v1412 = vpack.c.b16 %v1172, %v1168
    %v1413 = vpack.c.b16 %v1173, %v1169
    %v1414 = vpack.c.b16 %v1174, %v1170
    %v1415 = vpack.c.b16 %v1179, %v1175
    %v1416 = vpack.c.b16 %v1180, %v1176
    %v1417 = vpack.c.b16 %v1181, %v1177
    %v1418 = vpack.c.b16 %v1182, %v1178
    %v1419 = vpack.c.b16 %v1187, %v1183
    %v1420 = vpack.c.b16 %v1188, %v1184
    %v1421 = vpack.c.b16 %v1189, %v1185
    %v1422 = vpack.c.b16 %v1190, %v1186
    %v1423 = vpack.c.b16 %v1195, %v1191
    %v1424 = vpack.c.b16 %v1196, %v1192
    %v1425 = vpack.c.b16 %v1197, %v1193
    %v1426 = vpack.c.b16 %v1198, %v1194
    %v1427 = vpack.c.b16 %v1203, %v1199
    %v1428 = vpack.c.b16 %v1204, %v1200
    %v1429 = vpack.c.b16 %v1205, %v1201
    %v1430 = vpack.c.b16 %v1206, %v1202
    %v1431 = vpack.c.b16 %v1211, %v1207
    %v1432 = vpack.c.b16 %v1212, %v1208
    %v1433 = vpack.c.b16 %v1213, %v1209
    %v1434 = vpack.c.b16 %v1214, %v1210
    %v1435 = vpack.c.b16 %v1219, %v1215
    %v1436 = vpack.c.b16 %v1220, %v1216
    %v1437 = vpack.c.b16 %v1221, %v1217
    %v1438 = vpack.c.b16 %v1222, %v1218
    %v1439 = vpack.c.b16 %v1227, %v1223
    %v1440 = vpack.c.b16 %v1228, %v1224
    %v1441 = vpack.c.b16 %v1229, %v1225
    %v1442 = vpack.c.b16 %v1230, %v1226
    %v1443 = vpack.c.b16 %v1235, %v1231
    %v1444 = vpack.c.b16 %v1236, %v1232
    %v1445 = vpack.c.b16 %v1237, %v1233
    %v1446 = vpack.c.b16 %v1238, %v1234
    %v1447 = vpack.c.b16 %v1243, %v1239
    %v1448 = vpack.c.b16 %v1244, %v1240
    %v1449 = vpack.c.b16 %v1245, %v1241
    %v1450 = vpack.c.b16 %v1246, %v1242
    %v1451 = vpack.c.b16 %v1251, %v1247
    %v1452 = vpack.c.b16 %v1252, %v1248
    %v1453 = vpack.c.b16 %v1253, %v1249
    %v1454 = vpack.c.b16 %v1254, %v1250
    %v1455 = vpack.c.b16 %v1259, %v1255
    %v1456 = vpack.c.b16 %v1260, %v1256
    %v1457 = vpack.c.b16 %v1261, %v1257
    %v1458 = vpack.c.b16 %v1262, %v1258
    %v1459 = vpack.c.b16 %v1267, %v1263
    %v1460 = vpack.c.b16 %v1268, %v1264
    %v1461 = vpack.c.b16 %v1269, %v1265
    %v1462 = vpack.c.b16 %v1270, %v1266
    %v1463 = vpack.c.b16 %v1275, %v1271
    %v1464 = vpack.c.b16 %v1276, %v1272
    %v1465 = vpack.c.b16 %v1277, %v1273
    %v1466 = vpack.c.b16 %v1278, %v1274
    %v1467 = vpack.c.b16 %v1283, %v1279
    %v1468 = vpack.c.b16 %v1284, %v1280
    %v1469 = vpack.c.b16 %v1285, %v1281
    %v1470 = vpack.c.b16 %v1286, %v1282
    %v1471 = vpack.c.b16 %v1291, %v1287
    %v1472 = vpack.c.b16 %v1292, %v1288
    %v1473 = vpack.c.b16 %v1293, %v1289
    %v1474 = vpack.c.b16 %v1294, %v1290
    %v1475 = vpack.c.b16 %v1299, %v1295
    %v1476 = vpack.c.b16 %v1300, %v1296
    %v1477 = vpack.c.b16 %v1301, %v1297
    %v1478 = vpack.c.b16 %v1302, %v1298
    %v1479 = vpack.c.b16 %v1307, %v1303
    %v1480 = vpack.c.b16 %v1308, %v1304
    %v1481 = vpack.c.b16 %v1309, %v1305
    %v1482 = vpack.c.b16 %v1310, %v1306
    %v1483 = vpack.c.b16 %v1315, %v1311
    %v1484 = vpack.c.b16 %v1316, %v1312
    %v1485 = vpack.c.b16 %v1317, %v1313
    %v1486 = vpack.c.b16 %v1318, %v1314
    %v1487 = vpack.c.b16 %v1323, %v1319
    %v1488 = vpack.c.b16 %v1324, %v1320
    %v1489 = vpack.c.b16 %v1325, %v1321
    %v1490 = vpack.c.b16 %v1326, %v1322
    %v1491 = vpack.c.b16 %v1331, %v1327
    %v1492 = vpack.c.b16 %v1332, %v1328
    %v1493 = vpack.c.b16 %v1333, %v1329
    %v1494 = vpack.c.b16 %v1334, %v1330
    %v1495 = vpack.c.b16 %v1339, %v1335
    %v1496 = vpack.c.b16 %v1340, %v1336
    %v1497 = vpack.c.b16 %v1341, %v1337
    %v1498 = vpack.c.b16 %v1342, %v1338
    %v1499 = vpack.c.b16 %v1347, %v1343
    %v1500 = vpack.c.b16 %v1348, %v1344
    %v1501 = vpack.c.b16 %v1349, %v1345
    %v1502 = vpack.c.b16 %v1350, %v1346
    %v1503 = vpack.c.b16 %v1355, %v1351
    %v1504 = vpack.c.b16 %v1356, %v1352
    %v1505 = vpack.c.b16 %v1357, %v1353
    %v1506 = vpack.c.b16 %v1358, %v1354
    %v1507 = vpack.c.b16 %v1363, %v1359
    %v1508 = vpack.c.b16 %v1364, %v1360
    %v1509 = vpack.c.b16 %v1365, %v1361
    %v1510 = vpack.c.b16 %v1366, %v1362
    %v1511 = vpack.c.b16 %v1371, %v1367
    %v1512 = vpack.c.b16 %v1372, %v1368
    %v1513 = vpack.c.b16 %v1373, %v1369
    %v1514 = vpack.c.b16 %v1374, %v1370
    %v1515 = vpack.c.b16 %v1379, %v1375
    %v1516 = vpack.c.b16 %v1380, %v1376
    %v1517 = vpack.c.b16 %v1381, %v1377
    %v1518 = vpack.c.b16 %v1382, %v1378
    %v1519 = vpack.c.b16 %v1387, %v1383
    %v1520 = vpack.c.b16 %v1388, %v1384
    %v1521 = vpack.c.b16 %v1389, %v1385
    %v1522 = vpack.c.b16 %v1390, %v1386
    %v1523 = vpack.c.b16 %v1395, %v1391
    %v1524 = vpack.c.b16 %v1396, %v1392
    %v1525 = vpack.c.b16 %v1397, %v1393
    %v1526 = vpack.c.b16 %v1398, %v1394
    %1655 = vmatprep.subr.bf16.mxu0 %v1400
    %1656 = vmatpush1.bf16.msra.mxu0 %v1399
    %1657 = vmatprep.subr.bf16.mxu0 %v1404
    %1658 = vmatpush1.bf16.msra.mxu0 %v1403
    %1659 = vmatprep.subr.bf16.mxu0 %v1408
    %1660 = vmatpush1.bf16.msra.mxu0 %v1407
    %1661 = vmatprep.subr.bf16.mxu0 %v1412
    %1662 = vmatpush1.bf16.msra.mxu0 %v1411
    %1663 = vmatprep.subr.bf16.mxu0 %v1416
    %1664 = vmatpush1.bf16.msra.mxu0 %v1415
    %1665 = vmatprep.subr.bf16.mxu0 %v1420
    %1666 = vmatpush1.bf16.msra.mxu0 %v1419
    %1667 = vmatprep.subr.bf16.mxu0 %v1424
    %1668 = vmatpush1.bf16.msra.mxu0 %v1423
    %1669 = vmatprep.subr.bf16.mxu0 %v1428
    %1670 = vmatpush1.bf16.msra.mxu0 %v1427
    %1671 = vmatprep.subr.bf16.mxu0 %v1432
    %1672 = vmatpush1.bf16.msra.mxu0 %v1431
    %1673 = vmatprep.subr.bf16.mxu0 %v1436
    %1674 = vmatpush1.bf16.msra.mxu0 %v1435
    %1675 = vmatprep.subr.bf16.mxu0 %v1440
    %1676 = vmatpush1.bf16.msra.mxu0 %v1439
    %1677 = vmatprep.subr.bf16.mxu0 %v1444
    %1678 = vmatpush1.bf16.msra.mxu0 %v1443
    %1679 = vmatprep.subr.bf16.mxu0 %v1448
    %1680 = vmatpush1.bf16.msra.mxu0 %v1447
    %1681 = vmatprep.subr.bf16.mxu0 %v1452
    %1682 = vmatpush1.bf16.msra.mxu0 %v1451
    %1683 = vmatprep.subr.bf16.mxu0 %v1456
    %1684 = vmatpush1.bf16.msra.mxu0 %v1455
    %1685 = vmatprep.subr.bf16.mxu0 %v1460
    %1686 = vmatpush1.bf16.msra.mxu0 %v1459
    %1687 = vmatprep.mubr.bf16.mxu0 %v952
    %1688 = vmatmul.mubr.bf16.gmra.mrb[0].mxu0 %v951
    %v1689 = vpop.f32.mrb[0].mxu0
    %v1690 = vadd.f32 0.0, %v1689
    %v1691 = vpop.f32.mrb[0].mxu0
    %v1692 = vadd.f32 0.0, %v1691
    %v1693 = vpop.f32.mrb[0].mxu0
    %v1694 = vadd.f32 0.0, %v1693
    %v1695 = vpop.f32.mrb[0].mxu0
    %v1696 = vadd.f32 0.0, %v1695
    %1697 = vmatprep.mubr.bf16.mxu0 %v956
    %1698 = vmatmul.mubr.bf16.gmra.mrb[0].mxu0 %v955
    %v1699 = vpop.f32.mrb[0].mxu0
    %v1700 = vadd.f32 0.0, %v1699
    %v1701 = vpop.f32.mrb[0].mxu0
    %v1702 = vadd.f32 0.0, %v1701
    %v1703 = vpop.f32.mrb[0].mxu0
    %v1704 = vadd.f32 0.0, %v1703
    %v1705 = vpop.f32.mrb[0].mxu0
    %v1706 = vadd.f32 0.0, %v1705
    %1707 = vmatprep.mubr.bf16.mxu0 %v960
    %1708 = vmatmul.mubr.bf16.gmra.mrb[0].mxu0 %v959
    %v1709 = vpop.f32.mrb[0].mxu0
    %v1710 = vadd.f32 0.0, %v1709
    %v1711 = vpop.f32.mrb[0].mxu0
    %v1712 = vadd.f32 0.0, %v1711
    %v1713 = vpop.f32.mrb[0].mxu0
    %v1714 = vadd.f32 0.0, %v1713
    %v1715 = vpop.f32.mrb[0].mxu0
    %v1716 = vadd.f32 0.0, %v1715
    %1717 = vmatprep.mubr.bf16.mxu0 %v964
    %1718 = vmatmul.mubr.bf16.gmra.mrb[0].mxu0 %v963
    %v1719 = vpop.f32.mrb[0].mxu0
    %v1720 = vadd.f32 0.0, %v1719
    %v1721 = vpop.f32.mrb[0].mxu0
    %v1722 = vadd.f32 0.0, %v1721
    %v1723 = vpop.f32.mrb[0].mxu0
    %v1724 = vadd.f32 0.0, %v1723
    %v1725 = vpop.f32.mrb[0].mxu0
    %v1726 = vadd.f32 0.0, %v1725
    %1727 = vmatprep.mubr.bf16.mxu0 %v968
    %1728 = vmatmul.mubr.bf16.gmra.mrb[0].mxu0 %v967
    %v1729 = vpop.f32.mrb[0].mxu0
    %v1730 = vadd.f32 0.0, %v1729
    %v1731 = vpop.f32.mrb[0].mxu0
    %v1732 = vadd.f32 0.0, %v1731
    %v1733 = vpop.f32.mrb[0].mxu0
    %v1734 = vadd.f32 0.0, %v1733
    %v1735 = vpop.f32.mrb[0].mxu0
    %v1736 = vadd.f32 0.0, %v1735
    %1737 = vmatprep.mubr.bf16.mxu0 %v972
    %1738 = vmatmul.mubr.bf16.gmra.mrb[0].mxu0 %v971
    %v1739 = vpop.f32.mrb[0].mxu0
    %v1740 = vadd.f32 0.0, %v1739
    %v1741 = vpop.f32.mrb[0].mxu0
    %v1742 = vadd.f32 0.0, %v1741
    %v1743 = vpop.f32.mrb[0].mxu0
    %v1744 = vadd.f32 0.0, %v1743
    %v1745 = vpop.f32.mrb[0].mxu0
    %v1746 = vadd.f32 0.0, %v1745
    %1747 = vmatprep.mubr.bf16.mxu0 %v976
    %1748 = vmatmul.mubr.bf16.gmra.mrb[0].mxu0 %v975
    %v1749 = vpop.f32.mrb[0].mxu0
    %v1750 = vadd.f32 0.0, %v1749
    %v1751 = vpop.f32.mrb[0].mxu0
    %v1752 = vadd.f32 0.0, %v1751
    %v1753 = vpop.f32.mrb[0].mxu0
    %v1754 = vadd.f32 0.0, %v1753
    %v1755 = vpop.f32.mrb[0].mxu0
    %v1756 = vadd.f32 0.0, %v1755
    %1757 = vmatprep.mubr.bf16.mxu0 %v980
    %1758 = vmatmul.mubr.bf16.gmra.mrb[0].mxu0 %v979
    %v1759 = vpop.f32.mrb[0].mxu0
    %v1760 = vadd.f32 0.0, %v1759
    %v1761 = vpop.f32.mrb[0].mxu0
    %v1762 = vadd.f32 0.0, %v1761
    %v1763 = vpop.f32.mrb[0].mxu0
    %v1764 = vadd.f32 0.0, %v1763
    %v1765 = vpop.f32.mrb[0].mxu0
    %v1766 = vadd.f32 0.0, %v1765
    %1767 = vmatprep.mubr.bf16.mxu0 %v984
    %1768 = vmatmul.mubr.bf16.gmra.mrb[0].mxu0 %v983
    %v1769 = vpop.f32.mrb[0].mxu0
    %v1770 = vadd.f32 0.0, %v1769
    %v1771 = vpop.f32.mrb[0].mxu0
    %v1772 = vadd.f32 0.0, %v1771
    %v1773 = vpop.f32.mrb[0].mxu0
    %v1774 = vadd.f32 0.0, %v1773
    %v1775 = vpop.f32.mrb[0].mxu0
    %v1776 = vadd.f32 0.0, %v1775
    %1777 = vmatprep.mubr.bf16.mxu0 %v988
    %1778 = vmatmul.mubr.bf16.gmra.mrb[0].mxu0 %v987
    %v1779 = vpop.f32.mrb[0].mxu0
    %v1780 = vadd.f32 0.0, %v1779
    %v1781 = vpop.f32.mrb[0].mxu0
    %v1782 = vadd.f32 0.0, %v1781
    %v1783 = vpop.f32.mrb[0].mxu0
    %v1784 = vadd.f32 0.0, %v1783
    %v1785 = vpop.f32.mrb[0].mxu0
    %v1786 = vadd.f32 0.0, %v1785
    %1787 = vmatprep.mubr.bf16.mxu0 %v992
    %1788 = vmatmul.mubr.bf16.gmra.mrb[0].mxu0 %v991
    %v1789 = vpop.f32.mrb[0].mxu0
    %v1790 = vadd.f32 0.0, %v1789
    %v1791 = vpop.f32.mrb[0].mxu0
    %v1792 = vadd.f32 0.0, %v1791
    %v1793 = vpop.f32.mrb[0].mxu0
    %v1794 = vadd.f32 0.0, %v1793
    %v1795 = vpop.f32.mrb[0].mxu0
    %v1796 = vadd.f32 0.0, %v1795
    %1797 = vmatprep.mubr.bf16.mxu0 %v996
    %1798 = vmatmul.mubr.bf16.gmra.mrb[0].mxu0 %v995
    %v1799 = vpop.f32.mrb[0].mxu0
    %v1800 = vadd.f32 0.0, %v1799
    %v1801 = vpop.f32.mrb[0].mxu0
    %v1802 = vadd.f32 0.0, %v1801
    %v1803 = vpop.f32.mrb[0].mxu0
    %v1804 = vadd.f32 0.0, %v1803
    %v1805 = vpop.f32.mrb[0].mxu0
    %v1806 = vadd.f32 0.0, %v1805
    %1807 = vmatprep.mubr.bf16.mxu0 %v1000
    %1808 = vmatmul.mubr.bf16.gmra.mrb[0].mxu0 %v999
    %v1809 = vpop.f32.mrb[0].mxu0
    %v1810 = vadd.f32 0.0, %v1809
    %v1811 = vpop.f32.mrb[0].mxu0
    %v1812 = vadd.f32 0.0, %v1811
    %v1813 = vpop.f32.mrb[0].mxu0
    %v1814 = vadd.f32 0.0, %v1813
    %v1815 = vpop.f32.mrb[0].mxu0
    %v1816 = vadd.f32 0.0, %v1815
    %1817 = vmatprep.mubr.bf16.mxu0 %v1004
    %1818 = vmatmul.mubr.bf16.gmra.mrb[0].mxu0 %v1003
    %v1819 = vpop.f32.mrb[0].mxu0
    %v1820 = vadd.f32 0.0, %v1819
    %v1821 = vpop.f32.mrb[0].mxu0
    %v1822 = vadd.f32 0.0, %v1821
    %v1823 = vpop.f32.mrb[0].mxu0
    %v1824 = vadd.f32 0.0, %v1823
    %v1825 = vpop.f32.mrb[0].mxu0
    %v1826 = vadd.f32 0.0, %v1825
    %1827 = vmatprep.mubr.bf16.mxu0 %v1008
    %1828 = vmatmul.mubr.bf16.gmra.mrb[0].mxu0 %v1007
    %v1829 = vpop.f32.mrb[0].mxu0
    %v1830 = vadd.f32 0.0, %v1829
    %v1831 = vpop.f32.mrb[0].mxu0
    %v1832 = vadd.f32 0.0, %v1831
    %v1833 = vpop.f32.mrb[0].mxu0
    %v1834 = vadd.f32 0.0, %v1833
    %v1835 = vpop.f32.mrb[0].mxu0
    %v1836 = vadd.f32 0.0, %v1835
    %1837 = vmatprep.mubr.bf16.mxu0 %v1012
    %1838 = vmatmul.mubr.bf16.gmra.mrb[0].mxu0 %v1011
    %v1839 = vpop.f32.mrb[0].mxu0
    %v1840 = vadd.f32 0.0, %v1839
    %v1841 = vpop.f32.mrb[0].mxu0
    %v1842 = vadd.f32 0.0, %v1841
    %v1843 = vpop.f32.mrb[0].mxu0
    %v1844 = vadd.f32 0.0, %v1843
    %v1845 = vpop.f32.mrb[0].mxu0
    %v1846 = vadd.f32 0.0, %v1845
    %1847 = vdwg.mxu0
    %1848 = vmatprep.subr.bf16.mxu0 %v1464
    %1849 = vmatpush1.bf16.msra.mxu0 %v1463
    %1850 = vmatprep.subr.bf16.mxu0 %v1468
    %1851 = vmatpush1.bf16.msra.mxu0 %v1467
    %1852 = vmatprep.subr.bf16.mxu0 %v1472
    %1853 = vmatpush1.bf16.msra.mxu0 %v1471
    %1854 = vmatprep.subr.bf16.mxu0 %v1476
    %1855 = vmatpush1.bf16.msra.mxu0 %v1475
    %1856 = vmatprep.subr.bf16.mxu0 %v1480
    %1857 = vmatpush1.bf16.msra.mxu0 %v1479
    %1858 = vmatprep.subr.bf16.mxu0 %v1484
    %1859 = vmatpush1.bf16.msra.mxu0 %v1483
    %1860 = vmatprep.subr.bf16.mxu0 %v1488
    %1861 = vmatpush1.bf16.msra.mxu0 %v1487
    %1862 = vmatprep.subr.bf16.mxu0 %v1492
    %1863 = vmatpush1.bf16.msra.mxu0 %v1491
    %1864 = vmatprep.subr.bf16.mxu0 %v1496
    %1865 = vmatpush1.bf16.msra.mxu0 %v1495
    %1866 = vmatprep.subr.bf16.mxu0 %v1500
    %1867 = vmatpush1.bf16.msra.mxu0 %v1499
    %1868 = vmatprep.subr.bf16.mxu0 %v1504
    %1869 = vmatpush1.bf16.msra.mxu0 %v1503
    %1870 = vmatprep.subr.bf16.mxu0 %v1508
    %1871 = vmatpush1.bf16.msra.mxu0 %v1507
    %1872 = vmatprep.subr.bf16.mxu0 %v1512
    %1873 = vmatpush1.bf16.msra.mxu0 %v1511
    %1874 = vmatprep.subr.bf16.mxu0 %v1516
    %1875 = vmatpush1.bf16.msra.mxu0 %v1515
    %1876 = vmatprep.subr.bf16.mxu0 %v1520
    %1877 = vmatpush1.bf16.msra.mxu0 %v1519
    %1878 = vmatprep.subr.bf16.mxu0 %v1524
    %1879 = vmatpush1.bf16.msra.mxu0 %v1523
    %1880 = vmatprep.mubr.bf16.mxu0 %v954
    %1881 = vmatmul.mubr.bf16.gmra.mrb[0].mxu0 %v953
    %v1882 = vpop.f32.mrb[0].mxu0
    %v1883 = vadd.f32 %v1690, %v1882
    %v1884 = vpop.f32.mrb[0].mxu0
    %v1885 = vadd.f32 %v1692, %v1884
    %v1886 = vpop.f32.mrb[0].mxu0
    %v1887 = vadd.f32 %v1694, %v1886
    %v1888 = vpop.f32.mrb[0].mxu0
    %v1889 = vadd.f32 %v1696, %v1888
    %1890 = vmatprep.mubr.bf16.mxu0 %v958
    %1891 = vmatmul.mubr.bf16.gmra.mrb[0].mxu0 %v957
    %v1892 = vpop.f32.mrb[0].mxu0
    %v1893 = vadd.f32 %v1700, %v1892
    %v1894 = vpop.f32.mrb[0].mxu0
    %v1895 = vadd.f32 %v1702, %v1894
    %v1896 = vpop.f32.mrb[0].mxu0
    %v1897 = vadd.f32 %v1704, %v1896
    %v1898 = vpop.f32.mrb[0].mxu0
    %v1899 = vadd.f32 %v1706, %v1898
    %1900 = vmatprep.mubr.bf16.mxu0 %v962
    %1901 = vmatmul.mubr.bf16.gmra.mrb[0].mxu0 %v961
    %v1902 = vpop.f32.mrb[0].mxu0
    %v1903 = vadd.f32 %v1710, %v1902
    %v1904 = vpop.f32.mrb[0].mxu0
    %v1905 = vadd.f32 %v1712, %v1904
    %v1906 = vpop.f32.mrb[0].mxu0
    %v1907 = vadd.f32 %v1714, %v1906
    %v1908 = vpop.f32.mrb[0].mxu0
    %v1909 = vadd.f32 %v1716, %v1908
    %1910 = vmatprep.mubr.bf16.mxu0 %v966
    %1911 = vmatmul.mubr.bf16.gmra.mrb[0].mxu0 %v965
    %v1912 = vpop.f32.mrb[0].mxu0
    %v1913 = vadd.f32 %v1720, %v1912
    %v1914 = vpop.f32.mrb[0].mxu0
    %v1915 = vadd.f32 %v1722, %v1914
    %v1916 = vpop.f32.mrb[0].mxu0
    %v1917 = vadd.f32 %v1724, %v1916
    %v1918 = vpop.f32.mrb[0].mxu0
    %v1919 = vadd.f32 %v1726, %v1918
    %1920 = vmatprep.mubr.bf16.mxu0 %v970
    %1921 = vmatmul.mubr.bf16.gmra.mrb[0].mxu0 %v969
    %v1922 = vpop.f32.mrb[0].mxu0
    %v1923 = vadd.f32 %v1730, %v1922
    %v1924 = vpop.f32.mrb[0].mxu0
    %v1925 = vadd.f32 %v1732, %v1924
    %v1926 = vpop.f32.mrb[0].mxu0
    %v1927 = vadd.f32 %v1734, %v1926
    %v1928 = vpop.f32.mrb[0].mxu0
    %v1929 = vadd.f32 %v1736, %v1928
    %1930 = vmatprep.mubr.bf16.mxu0 %v974
    %1931 = vmatmul.mubr.bf16.gmra.mrb[0].mxu0 %v973
    %v1932 = vpop.f32.mrb[0].mxu0
    %v1933 = vadd.f32 %v1740, %v1932
    %v1934 = vpop.f32.mrb[0].mxu0
    %v1935 = vadd.f32 %v1742, %v1934
    %v1936 = vpop.f32.mrb[0].mxu0
    %v1937 = vadd.f32 %v1744, %v1936
    %v1938 = vpop.f32.mrb[0].mxu0
    %v1939 = vadd.f32 %v1746, %v1938
    %1940 = vmatprep.mubr.bf16.mxu0 %v978
    %1941 = vmatmul.mubr.bf16.gmra.mrb[0].mxu0 %v977
    %v1942 = vpop.f32.mrb[0].mxu0
    %v1943 = vadd.f32 %v1750, %v1942
    %v1944 = vpop.f32.mrb[0].mxu0
    %v1945 = vadd.f32 %v1752, %v1944
    %v1946 = vpop.f32.mrb[0].mxu0
    %v1947 = vadd.f32 %v1754, %v1946
    %v1948 = vpop.f32.mrb[0].mxu0
    %v1949 = vadd.f32 %v1756, %v1948
    %1950 = vmatprep.mubr.bf16.mxu0 %v982
    %1951 = vmatmul.mubr.bf16.gmra.mrb[0].mxu0 %v981
    %v1952 = vpop.f32.mrb[0].mxu0
    %v1953 = vadd.f32 %v1760, %v1952
    %v1954 = vpop.f32.mrb[0].mxu0
    %v1955 = vadd.f32 %v1762, %v1954
    %v1956 = vpop.f32.mrb[0].mxu0
    %v1957 = vadd.f32 %v1764, %v1956
    %v1958 = vpop.f32.mrb[0].mxu0
    %v1959 = vadd.f32 %v1766, %v1958
    %1960 = vmatprep.mubr.bf16.mxu0 %v986
    %1961 = vmatmul.mubr.bf16.gmra.mrb[0].mxu0 %v985
    %v1962 = vpop.f32.mrb[0].mxu0
    %v1963 = vadd.f32 %v1770, %v1962
    %v1964 = vpop.f32.mrb[0].mxu0
    %v1965 = vadd.f32 %v1772, %v1964
    %v1966 = vpop.f32.mrb[0].mxu0
    %v1967 = vadd.f32 %v1774, %v1966
    %v1968 = vpop.f32.mrb[0].mxu0
    %v1969 = vadd.f32 %v1776, %v1968
    %1970 = vmatprep.mubr.bf16.mxu0 %v990
    %1971 = vmatmul.mubr.bf16.gmra.mrb[0].mxu0 %v989
    %v1972 = vpop.f32.mrb[0].mxu0
    %v1973 = vadd.f32 %v1780, %v1972
    %v1974 = vpop.f32.mrb[0].mxu0
    %v1975 = vadd.f32 %v1782, %v1974
    %v1976 = vpop.f32.mrb[0].mxu0
    %v1977 = vadd.f32 %v1784, %v1976
    %v1978 = vpop.f32.mrb[0].mxu0
    %v1979 = vadd.f32 %v1786, %v1978
    %1980 = vmatprep.mubr.bf16.mxu0 %v994
    %1981 = vmatmul.mubr.bf16.gmra.mrb[0].mxu0 %v993
    %v1982 = vpop.f32.mrb[0].mxu0
    %v1983 = vadd.f32 %v1790, %v1982
    %v1984 = vpop.f32.mrb[0].mxu0
    %v1985 = vadd.f32 %v1792, %v1984
    %v1986 = vpop.f32.mrb[0].mxu0
    %v1987 = vadd.f32 %v1794, %v1986
    %v1988 = vpop.f32.mrb[0].mxu0
    %v1989 = vadd.f32 %v1796, %v1988
    %1990 = vmatprep.mubr.bf16.mxu0 %v998
    %1991 = vmatmul.mubr.bf16.gmra.mrb[0].mxu0 %v997
    %v1992 = vpop.f32.mrb[0].mxu0
    %v1993 = vadd.f32 %v1800, %v1992
    %v1994 = vpop.f32.mrb[0].mxu0
    %v1995 = vadd.f32 %v1802, %v1994
    %v1996 = vpop.f32.mrb[0].mxu0
    %v1997 = vadd.f32 %v1804, %v1996
    %v1998 = vpop.f32.mrb[0].mxu0
    %v1999 = vadd.f32 %v1806, %v1998
    %2000 = vmatprep.mubr.bf16.mxu0 %v1002
    %2001 = vmatmul.mubr.bf16.gmra.mrb[0].mxu0 %v1001
    %v2002 = vpop.f32.mrb[0].mxu0
    %v2003 = vadd.f32 %v1810, %v2002
    %v2004 = vpop.f32.mrb[0].mxu0
    %v2005 = vadd.f32 %v1812, %v2004
    %v2006 = vpop.f32.mrb[0].mxu0
    %v2007 = vadd.f32 %v1814, %v2006
    %v2008 = vpop.f32.mrb[0].mxu0
    %v2009 = vadd.f32 %v1816, %v2008
    %2010 = vmatprep.mubr.bf16.mxu0 %v1006
    %2011 = vmatmul.mubr.bf16.gmra.mrb[0].mxu0 %v1005
    %v2012 = vpop.f32.mrb[0].mxu0
    %v2013 = vadd.f32 %v1820, %v2012
    %v2014 = vpop.f32.mrb[0].mxu0
    %v2015 = vadd.f32 %v1822, %v2014
    %v2016 = vpop.f32.mrb[0].mxu0
    %v2017 = vadd.f32 %v1824, %v2016
    %v2018 = vpop.f32.mrb[0].mxu0
    %v2019 = vadd.f32 %v1826, %v2018
    %2020 = vmatprep.mubr.bf16.mxu0 %v1010
    %2021 = vmatmul.mubr.bf16.gmra.mrb[0].mxu0 %v1009
    %v2022 = vpop.f32.mrb[0].mxu0
    %v2023 = vadd.f32 %v1830, %v2022
    %v2024 = vpop.f32.mrb[0].mxu0
    %v2025 = vadd.f32 %v1832, %v2024
    %v2026 = vpop.f32.mrb[0].mxu0
    %v2027 = vadd.f32 %v1834, %v2026
    %v2028 = vpop.f32.mrb[0].mxu0
    %v2029 = vadd.f32 %v1836, %v2028
    %2030 = vmatprep.mubr.bf16.mxu0 %v1014
    %2031 = vmatmul.mubr.bf16.gmra.mrb[0].mxu0 %v1013
    %v2032 = vpop.f32.mrb[0].mxu0
    %v2033 = vadd.f32 %v1840, %v2032
    %v2034 = vpop.f32.mrb[0].mxu0
    %v2035 = vadd.f32 %v1842, %v2034
    %v2036 = vpop.f32.mrb[0].mxu0
    %v2037 = vadd.f32 %v1844, %v2036
    %v2038 = vpop.f32.mrb[0].mxu0
    %v2039 = vadd.f32 %v1846, %v2038
    %2040 = vdwg.mxu0
    %2041 = vmatprep.subr.bf16.mxu0 %v1402
    %2042 = vmatpush1.bf16.msra.mxu0 %v1401
    %2043 = vmatprep.subr.bf16.mxu0 %v1406
    %2044 = vmatpush1.bf16.msra.mxu0 %v1405
    %2045 = vmatprep.subr.bf16.mxu0 %v1410
    %2046 = vmatpush1.bf16.msra.mxu0 %v1409
    %2047 = vmatprep.subr.bf16.mxu0 %v1414
    %2048 = vmatpush1.bf16.msra.mxu0 %v1413
    %2049 = vmatprep.subr.bf16.mxu0 %v1418
    %2050 = vmatpush1.bf16.msra.mxu0 %v1417
    %2051 = vmatprep.subr.bf16.mxu0 %v1422
    %2052 = vmatpush1.bf16.msra.mxu0 %v1421
    %2053 = vmatprep.subr.bf16.mxu0 %v1426
    %2054 = vmatpush1.bf16.msra.mxu0 %v1425
    %2055 = vmatprep.subr.bf16.mxu0 %v1430
    %2056 = vmatpush1.bf16.msra.mxu0 %v1429
    %2057 = vmatprep.subr.bf16.mxu0 %v1434
    %2058 = vmatpush1.bf16.msra.mxu0 %v1433
    %2059 = vmatprep.subr.bf16.mxu0 %v1438
    %2060 = vmatpush1.bf16.msra.mxu0 %v1437
    %2061 = vmatprep.subr.bf16.mxu0 %v1442
    %2062 = vmatpush1.bf16.msra.mxu0 %v1441
    %2063 = vmatprep.subr.bf16.mxu0 %v1446
    %2064 = vmatpush1.bf16.msra.mxu0 %v1445
    %2065 = vmatprep.subr.bf16.mxu0 %v1450
    %2066 = vmatpush1.bf16.msra.mxu0 %v1449
    %2067 = vmatprep.subr.bf16.mxu0 %v1454
    %2068 = vmatpush1.bf16.msra.mxu0 %v1453
    %2069 = vmatprep.subr.bf16.mxu0 %v1458
    %2070 = vmatpush1.bf16.msra.mxu0 %v1457
    %2071 = vmatprep.subr.bf16.mxu0 %v1462
    %2072 = vmatpush1.bf16.msra.mxu0 %v1461
    %2073 = vmatprep.mubr.bf16.mxu0 %v952
    %2074 = vmatmul.mubr.bf16.gmra.mrb[0].mxu0 %v951
    %v2075 = vpop.f32.mrb[0].mxu0
    %v2076 = vadd.f32 0.0, %v2075
    %v2077 = vpop.f32.mrb[0].mxu0
    %v2078 = vadd.f32 0.0, %v2077
    %v2079 = vpop.f32.mrb[0].mxu0
    %v2080 = vadd.f32 0.0, %v2079
    %v2081 = vpop.f32.mrb[0].mxu0
    %v2082 = vadd.f32 0.0, %v2081
    %2083 = vmatprep.mubr.bf16.mxu0 %v956
    %2084 = vmatmul.mubr.bf16.gmra.mrb[0].mxu0 %v955
    %v2085 = vpop.f32.mrb[0].mxu0
    %v2086 = vadd.f32 0.0, %v2085
    %v2087 = vpop.f32.mrb[0].mxu0
    %v2088 = vadd.f32 0.0, %v2087
    %v2089 = vpop.f32.mrb[0].mxu0
    %v2090 = vadd.f32 0.0, %v2089
    %v2091 = vpop.f32.mrb[0].mxu0
    %v2092 = vadd.f32 0.0, %v2091
    %2093 = vmatprep.mubr.bf16.mxu0 %v960
    %2094 = vmatmul.mubr.bf16.gmra.mrb[0].mxu0 %v959
    %v2095 = vpop.f32.mrb[0].mxu0
    %v2096 = vadd.f32 0.0, %v2095
    %v2097 = vpop.f32.mrb[0].mxu0
    %v2098 = vadd.f32 0.0, %v2097
    %v2099 = vpop.f32.mrb[0].mxu0
    %v2100 = vadd.f32 0.0, %v2099
    %v2101 = vpop.f32.mrb[0].mxu0
    %v2102 = vadd.f32 0.0, %v2101
    %2103 = vmatprep.mubr.bf16.mxu0 %v964
    %2104 = vmatmul.mubr.bf16.gmra.mrb[0].mxu0 %v963
    %v2105 = vpop.f32.mrb[0].mxu0
    %v2106 = vadd.f32 0.0, %v2105
    %v2107 = vpop.f32.mrb[0].mxu0
    %v2108 = vadd.f32 0.0, %v2107
    %v2109 = vpop.f32.mrb[0].mxu0
    %v2110 = vadd.f32 0.0, %v2109
    %v2111 = vpop.f32.mrb[0].mxu0
    %v2112 = vadd.f32 0.0, %v2111
    %2113 = vmatprep.mubr.bf16.mxu0 %v968
    %2114 = vmatmul.mubr.bf16.gmra.mrb[0].mxu0 %v967
    %v2115 = vpop.f32.mrb[0].mxu0
    %v2116 = vadd.f32 0.0, %v2115
    %v2117 = vpop.f32.mrb[0].mxu0
    %v2118 = vadd.f32 0.0, %v2117
    %v2119 = vpop.f32.mrb[0].mxu0
    %v2120 = vadd.f32 0.0, %v2119
    %v2121 = vpop.f32.mrb[0].mxu0
    %v2122 = vadd.f32 0.0, %v2121
    %2123 = vmatprep.mubr.bf16.mxu0 %v972
    %2124 = vmatmul.mubr.bf16.gmra.mrb[0].mxu0 %v971
    %v2125 = vpop.f32.mrb[0].mxu0
    %v2126 = vadd.f32 0.0, %v2125
    %v2127 = vpop.f32.mrb[0].mxu0
    %v2128 = vadd.f32 0.0, %v2127
    %v2129 = vpop.f32.mrb[0].mxu0
    %v2130 = vadd.f32 0.0, %v2129
    %v2131 = vpop.f32.mrb[0].mxu0
    %v2132 = vadd.f32 0.0, %v2131
    %2133 = vmatprep.mubr.bf16.mxu0 %v976
    %2134 = vmatmul.mubr.bf16.gmra.mrb[0].mxu0 %v975
    %v2135 = vpop.f32.mrb[0].mxu0
    %v2136 = vadd.f32 0.0, %v2135
    %v2137 = vpop.f32.mrb[0].mxu0
    %v2138 = vadd.f32 0.0, %v2137
    %v2139 = vpop.f32.mrb[0].mxu0
    %v2140 = vadd.f32 0.0, %v2139
    %v2141 = vpop.f32.mrb[0].mxu0
    %v2142 = vadd.f32 0.0, %v2141
    %2143 = vmatprep.mubr.bf16.mxu0 %v980
    %2144 = vmatmul.mubr.bf16.gmra.mrb[0].mxu0 %v979
    %v2145 = vpop.f32.mrb[0].mxu0
    %v2146 = vadd.f32 0.0, %v2145
    %v2147 = vpop.f32.mrb[0].mxu0
    %v2148 = vadd.f32 0.0, %v2147
    %v2149 = vpop.f32.mrb[0].mxu0
    %v2150 = vadd.f32 0.0, %v2149
    %v2151 = vpop.f32.mrb[0].mxu0
    %v2152 = vadd.f32 0.0, %v2151
    %2153 = vmatprep.mubr.bf16.mxu0 %v984
    %2154 = vmatmul.mubr.bf16.gmra.mrb[0].mxu0 %v983
    %v2155 = vpop.f32.mrb[0].mxu0
    %v2156 = vadd.f32 0.0, %v2155
    %v2157 = vpop.f32.mrb[0].mxu0
    %v2158 = vadd.f32 0.0, %v2157
    %v2159 = vpop.f32.mrb[0].mxu0
    %v2160 = vadd.f32 0.0, %v2159
    %v2161 = vpop.f32.mrb[0].mxu0
    %v2162 = vadd.f32 0.0, %v2161
    %2163 = vmatprep.mubr.bf16.mxu0 %v988
    %2164 = vmatmul.mubr.bf16.gmra.mrb[0].mxu0 %v987
    %v2165 = vpop.f32.mrb[0].mxu0
    %v2166 = vadd.f32 0.0, %v2165
    %v2167 = vpop.f32.mrb[0].mxu0
    %v2168 = vadd.f32 0.0, %v2167
    %v2169 = vpop.f32.mrb[0].mxu0
    %v2170 = vadd.f32 0.0, %v2169
    %v2171 = vpop.f32.mrb[0].mxu0
    %v2172 = vadd.f32 0.0, %v2171
    %2173 = vmatprep.mubr.bf16.mxu0 %v992
    %2174 = vmatmul.mubr.bf16.gmra.mrb[0].mxu0 %v991
    %v2175 = vpop.f32.mrb[0].mxu0
    %v2176 = vadd.f32 0.0, %v2175
    %v2177 = vpop.f32.mrb[0].mxu0
    %v2178 = vadd.f32 0.0, %v2177
    %v2179 = vpop.f32.mrb[0].mxu0
    %v2180 = vadd.f32 0.0, %v2179
    %v2181 = vpop.f32.mrb[0].mxu0
    %v2182 = vadd.f32 0.0, %v2181
    %2183 = vmatprep.mubr.bf16.mxu0 %v996
    %2184 = vmatmul.mubr.bf16.gmra.mrb[0].mxu0 %v995
    %v2185 = vpop.f32.mrb[0].mxu0
    %v2186 = vadd.f32 0.0, %v2185
    %v2187 = vpop.f32.mrb[0].mxu0
    %v2188 = vadd.f32 0.0, %v2187
    %v2189 = vpop.f32.mrb[0].mxu0
    %v2190 = vadd.f32 0.0, %v2189
    %v2191 = vpop.f32.mrb[0].mxu0
    %v2192 = vadd.f32 0.0, %v2191
    %2193 = vmatprep.mubr.bf16.mxu0 %v1000
    %2194 = vmatmul.mubr.bf16.gmra.mrb[0].mxu0 %v999
    %v2195 = vpop.f32.mrb[0].mxu0
    %v2196 = vadd.f32 0.0, %v2195
    %v2197 = vpop.f32.mrb[0].mxu0
    %v2198 = vadd.f32 0.0, %v2197
    %v2199 = vpop.f32.mrb[0].mxu0
    %v2200 = vadd.f32 0.0, %v2199
    %v2201 = vpop.f32.mrb[0].mxu0
    %v2202 = vadd.f32 0.0, %v2201
    %2203 = vmatprep.mubr.bf16.mxu0 %v1004
    %2204 = vmatmul.mubr.bf16.gmra.mrb[0].mxu0 %v1003
    %v2205 = vpop.f32.mrb[0].mxu0
    %v2206 = vadd.f32 0.0, %v2205
    %v2207 = vpop.f32.mrb[0].mxu0
    %v2208 = vadd.f32 0.0, %v2207
    %v2209 = vpop.f32.mrb[0].mxu0
    %v2210 = vadd.f32 0.0, %v2209
    %v2211 = vpop.f32.mrb[0].mxu0
    %v2212 = vadd.f32 0.0, %v2211
    %2213 = vmatprep.mubr.bf16.mxu0 %v1008
    %2214 = vmatmul.mubr.bf16.gmra.mrb[0].mxu0 %v1007
    %v2215 = vpop.f32.mrb[0].mxu0
    %v2216 = vadd.f32 0.0, %v2215
    %v2217 = vpop.f32.mrb[0].mxu0
    %v2218 = vadd.f32 0.0, %v2217
    %v2219 = vpop.f32.mrb[0].mxu0
    %v2220 = vadd.f32 0.0, %v2219
    %v2221 = vpop.f32.mrb[0].mxu0
    %v2222 = vadd.f32 0.0, %v2221
    %2223 = vmatprep.mubr.bf16.mxu0 %v1012
    %2224 = vmatmul.mubr.bf16.gmra.mrb[0].mxu0 %v1011
    %v2225 = vpop.f32.mrb[0].mxu0
    %v2226 = vadd.f32 0.0, %v2225
    %v2227 = vpop.f32.mrb[0].mxu0
    %v2228 = vadd.f32 0.0, %v2227
    %v2229 = vpop.f32.mrb[0].mxu0
    %v2230 = vadd.f32 0.0, %v2229
    %v2231 = vpop.f32.mrb[0].mxu0
    %v2232 = vadd.f32 0.0, %v2231
    %2233 = vdwg.mxu0
    %2234 = vmatprep.subr.bf16.mxu0 %v1466
    %2235 = vmatpush1.bf16.msra.mxu0 %v1465
    %2236 = vmatprep.subr.bf16.mxu0 %v1470
    %2237 = vmatpush1.bf16.msra.mxu0 %v1469
    %2238 = vmatprep.subr.bf16.mxu0 %v1474
    %2239 = vmatpush1.bf16.msra.mxu0 %v1473
    %2240 = vmatprep.subr.bf16.mxu0 %v1478
    %2241 = vmatpush1.bf16.msra.mxu0 %v1477
    %2242 = vmatprep.subr.bf16.mxu0 %v1482
    %2243 = vmatpush1.bf16.msra.mxu0 %v1481
    %2244 = vmatprep.subr.bf16.mxu0 %v1486
    %2245 = vmatpush1.bf16.msra.mxu0 %v1485
    %2246 = vmatprep.subr.bf16.mxu0 %v1490
    %2247 = vmatpush1.bf16.msra.mxu0 %v1489
    %2248 = vmatprep.subr.bf16.mxu0 %v1494
    %2249 = vmatpush1.bf16.msra.mxu0 %v1493
    %2250 = vmatprep.subr.bf16.mxu0 %v1498
    %2251 = vmatpush1.bf16.msra.mxu0 %v1497
    %2252 = vmatprep.subr.bf16.mxu0 %v1502
    %2253 = vmatpush1.bf16.msra.mxu0 %v1501
    %2254 = vmatprep.subr.bf16.mxu0 %v1506
    %2255 = vmatpush1.bf16.msra.mxu0 %v1505
    %2256 = vmatprep.subr.bf16.mxu0 %v1510
    %2257 = vmatpush1.bf16.msra.mxu0 %v1509
    %2258 = vmatprep.subr.bf16.mxu0 %v1514
    %2259 = vmatpush1.bf16.msra.mxu0 %v1513
    %2260 = vmatprep.subr.bf16.mxu0 %v1518
    %2261 = vmatpush1.bf16.msra.mxu0 %v1517
    %2262 = vmatprep.subr.bf16.mxu0 %v1522
    %2263 = vmatpush1.bf16.msra.mxu0 %v1521
    %2264 = vmatprep.subr.bf16.mxu0 %v1526
    %2265 = vmatpush1.bf16.msra.mxu0 %v1525
    %2266 = vmatprep.mubr.bf16.mxu0 %v954
    %2267 = vmatmul.mubr.bf16.gmra.mrb[0].mxu0 %v953
    %v2268 = vpop.f32.mrb[0].mxu0
    %v2269 = vadd.f32 %v2076, %v2268
    %v2270 = vpop.f32.mrb[0].mxu0
    %v2271 = vadd.f32 %v2078, %v2270
    %v2272 = vpop.f32.mrb[0].mxu0
    %v2273 = vadd.f32 %v2080, %v2272
    %v2274 = vpop.f32.mrb[0].mxu0
    %v2275 = vadd.f32 %v2082, %v2274
    %2276 = vmatprep.mubr.bf16.mxu0 %v958
    %2277 = vmatmul.mubr.bf16.gmra.mrb[0].mxu0 %v957
    %v2278 = vpop.f32.mrb[0].mxu0
    %v2279 = vadd.f32 %v2086, %v2278
    %v2280 = vpop.f32.mrb[0].mxu0
    %v2281 = vadd.f32 %v2088, %v2280
    %v2282 = vpop.f32.mrb[0].mxu0
    %v2283 = vadd.f32 %v2090, %v2282
    %v2284 = vpop.f32.mrb[0].mxu0
    %v2285 = vadd.f32 %v2092, %v2284
    %2286 = vmatprep.mubr.bf16.mxu0 %v962
    %2287 = vmatmul.mubr.bf16.gmra.mrb[0].mxu0 %v961
    %v2288 = vpop.f32.mrb[0].mxu0
    %v2289 = vadd.f32 %v2096, %v2288
    %v2290 = vpop.f32.mrb[0].mxu0
    %v2291 = vadd.f32 %v2098, %v2290
    %v2292 = vpop.f32.mrb[0].mxu0
    %v2293 = vadd.f32 %v2100, %v2292
    %v2294 = vpop.f32.mrb[0].mxu0
    %v2295 = vadd.f32 %v2102, %v2294
    %2296 = vmatprep.mubr.bf16.mxu0 %v966
    %2297 = vmatmul.mubr.bf16.gmra.mrb[0].mxu0 %v965
    %v2298 = vpop.f32.mrb[0].mxu0
    %v2299 = vadd.f32 %v2106, %v2298
    %v2300 = vpop.f32.mrb[0].mxu0
    %v2301 = vadd.f32 %v2108, %v2300
    %v2302 = vpop.f32.mrb[0].mxu0
    %v2303 = vadd.f32 %v2110, %v2302
    %v2304 = vpop.f32.mrb[0].mxu0
    %v2305 = vadd.f32 %v2112, %v2304
    %2306 = vmatprep.mubr.bf16.mxu0 %v970
    %2307 = vmatmul.mubr.bf16.gmra.mrb[0].mxu0 %v969
    %v2308 = vpop.f32.mrb[0].mxu0
    %v2309 = vadd.f32 %v2116, %v2308
    %v2310 = vpop.f32.mrb[0].mxu0
    %v2311 = vadd.f32 %v2118, %v2310
    %v2312 = vpop.f32.mrb[0].mxu0
    %v2313 = vadd.f32 %v2120, %v2312
    %v2314 = vpop.f32.mrb[0].mxu0
    %v2315 = vadd.f32 %v2122, %v2314
    %2316 = vmatprep.mubr.bf16.mxu0 %v974
    %2317 = vmatmul.mubr.bf16.gmra.mrb[0].mxu0 %v973
    %v2318 = vpop.f32.mrb[0].mxu0
    %v2319 = vadd.f32 %v2126, %v2318
    %v2320 = vpop.f32.mrb[0].mxu0
    %v2321 = vadd.f32 %v2128, %v2320
    %v2322 = vpop.f32.mrb[0].mxu0
    %v2323 = vadd.f32 %v2130, %v2322
    %v2324 = vpop.f32.mrb[0].mxu0
    %v2325 = vadd.f32 %v2132, %v2324
    %2326 = vmatprep.mubr.bf16.mxu0 %v978
    %2327 = vmatmul.mubr.bf16.gmra.mrb[0].mxu0 %v977
    %v2328 = vpop.f32.mrb[0].mxu0
    %v2329 = vadd.f32 %v2136, %v2328
    %v2330 = vpop.f32.mrb[0].mxu0
    %v2331 = vadd.f32 %v2138, %v2330
    %v2332 = vpop.f32.mrb[0].mxu0
    %v2333 = vadd.f32 %v2140, %v2332
    %v2334 = vpop.f32.mrb[0].mxu0
    %v2335 = vadd.f32 %v2142, %v2334
    %2336 = vmatprep.mubr.bf16.mxu0 %v982
    %2337 = vmatmul.mubr.bf16.gmra.mrb[0].mxu0 %v981
    %v2338 = vpop.f32.mrb[0].mxu0
    %v2339 = vadd.f32 %v2146, %v2338
    %v2340 = vpop.f32.mrb[0].mxu0
    %v2341 = vadd.f32 %v2148, %v2340
    %v2342 = vpop.f32.mrb[0].mxu0
    %v2343 = vadd.f32 %v2150, %v2342
    %v2344 = vpop.f32.mrb[0].mxu0
    %v2345 = vadd.f32 %v2152, %v2344
    %2346 = vmatprep.mubr.bf16.mxu0 %v986
    %2347 = vmatmul.mubr.bf16.gmra.mrb[0].mxu0 %v985
    %v2348 = vpop.f32.mrb[0].mxu0
    %v2349 = vadd.f32 %v2156, %v2348
    %v2350 = vpop.f32.mrb[0].mxu0
    %v2351 = vadd.f32 %v2158, %v2350
    %v2352 = vpop.f32.mrb[0].mxu0
    %v2353 = vadd.f32 %v2160, %v2352
    %v2354 = vpop.f32.mrb[0].mxu0
    %v2355 = vadd.f32 %v2162, %v2354
    %2356 = vmatprep.mubr.bf16.mxu0 %v990
    %2357 = vmatmul.mubr.bf16.gmra.mrb[0].mxu0 %v989
    %v2358 = vpop.f32.mrb[0].mxu0
    %v2359 = vadd.f32 %v2166, %v2358
    %v2360 = vpop.f32.mrb[0].mxu0
    %v2361 = vadd.f32 %v2168, %v2360
    %v2362 = vpop.f32.mrb[0].mxu0
    %v2363 = vadd.f32 %v2170, %v2362
    %v2364 = vpop.f32.mrb[0].mxu0
    %v2365 = vadd.f32 %v2172, %v2364
    %2366 = vmatprep.mubr.bf16.mxu0 %v994
    %2367 = vmatmul.mubr.bf16.gmra.mrb[0].mxu0 %v993
    %v2368 = vpop.f32.mrb[0].mxu0
    %v2369 = vadd.f32 %v2176, %v2368
    %v2370 = vpop.f32.mrb[0].mxu0
    %v2371 = vadd.f32 %v2178, %v2370
    %v2372 = vpop.f32.mrb[0].mxu0
    %v2373 = vadd.f32 %v2180, %v2372
    %v2374 = vpop.f32.mrb[0].mxu0
    %v2375 = vadd.f32 %v2182, %v2374
    %2376 = vmatprep.mubr.bf16.mxu0 %v998
    %2377 = vmatmul.mubr.bf16.gmra.mrb[0].mxu0 %v997
    %v2378 = vpop.f32.mrb[0].mxu0
    %v2379 = vadd.f32 %v2186, %v2378
    %v2380 = vpop.f32.mrb[0].mxu0
    %v2381 = vadd.f32 %v2188, %v2380
    %v2382 = vpop.f32.mrb[0].mxu0
    %v2383 = vadd.f32 %v2190, %v2382
    %v2384 = vpop.f32.mrb[0].mxu0
    %v2385 = vadd.f32 %v2192, %v2384
    %2386 = vmatprep.mubr.bf16.mxu0 %v1002
    %2387 = vmatmul.mubr.bf16.gmra.mrb[0].mxu0 %v1001
    %v2388 = vpop.f32.mrb[0].mxu0
    %v2389 = vadd.f32 %v2196, %v2388
    %v2390 = vpop.f32.mrb[0].mxu0
    %v2391 = vadd.f32 %v2198, %v2390
    %v2392 = vpop.f32.mrb[0].mxu0
    %v2393 = vadd.f32 %v2200, %v2392
    %v2394 = vpop.f32.mrb[0].mxu0
    %v2395 = vadd.f32 %v2202, %v2394
    %2396 = vmatprep.mubr.bf16.mxu0 %v1006
    %2397 = vmatmul.mubr.bf16.gmra.mrb[0].mxu0 %v1005
    %v2398 = vpop.f32.mrb[0].mxu0
    %v2399 = vadd.f32 %v2206, %v2398
    %v2400 = vpop.f32.mrb[0].mxu0
    %v2401 = vadd.f32 %v2208, %v2400
    %v2402 = vpop.f32.mrb[0].mxu0
    %v2403 = vadd.f32 %v2210, %v2402
    %v2404 = vpop.f32.mrb[0].mxu0
    %v2405 = vadd.f32 %v2212, %v2404
    %2406 = vmatprep.mubr.bf16.mxu0 %v1010
    %2407 = vmatmul.mubr.bf16.gmra.mrb[0].mxu0 %v1009
    %v2408 = vpop.f32.mrb[0].mxu0
    %v2409 = vadd.f32 %v2216, %v2408
    %v2410 = vpop.f32.mrb[0].mxu0
    %v2411 = vadd.f32 %v2218, %v2410
    %v2412 = vpop.f32.mrb[0].mxu0
    %v2413 = vadd.f32 %v2220, %v2412
    %v2414 = vpop.f32.mrb[0].mxu0
    %v2415 = vadd.f32 %v2222, %v2414
    %2416 = vmatprep.mubr.bf16.mxu0 %v1014
    %2417 = vmatmul.mubr.bf16.gmra.mrb[0].mxu0 %v1013
    %v2418 = vpop.f32.mrb[0].mxu0
    %v2419 = vadd.f32 %v2226, %v2418
    %v2420 = vpop.f32.mrb[0].mxu0
    %v2421 = vadd.f32 %v2228, %v2420
    %v2422 = vpop.f32.mrb[0].mxu0
    %v2423 = vadd.f32 %v2230, %v2422
    %v2424 = vpop.f32.mrb[0].mxu0
    %v2425 = vadd.f32 %v2232, %v2424
    %2426 = vdwg.mxu0
    %v2427 = vpack.c.bf16 %v1887, %v1883
    %v2428 = vpack.c.bf16 %v1889, %v1885
    %v2429 = vpack.c.bf16 %v2273, %v2269
    %v2430 = vpack.c.bf16 %v2275, %v2271
    %v2431 = vpack.c.bf16 %v1897, %v1893
    %v2432 = vpack.c.bf16 %v1899, %v1895
    %v2433 = vpack.c.bf16 %v2283, %v2279
    %v2434 = vpack.c.bf16 %v2285, %v2281
    %v2435 = vpack.c.bf16 %v1907, %v1903
    %v2436 = vpack.c.bf16 %v1909, %v1905
    %v2437 = vpack.c.bf16 %v2293, %v2289
    %v2438 = vpack.c.bf16 %v2295, %v2291
    %v2439 = vpack.c.bf16 %v1917, %v1913
    %v2440 = vpack.c.bf16 %v1919, %v1915
    %v2441 = vpack.c.bf16 %v2303, %v2299
    %v2442 = vpack.c.bf16 %v2305, %v2301
    %v2443 = vpack.c.bf16 %v1927, %v1923
    %v2444 = vpack.c.bf16 %v1929, %v1925
    %v2445 = vpack.c.bf16 %v2313, %v2309
    %v2446 = vpack.c.bf16 %v2315, %v2311
    %v2447 = vpack.c.bf16 %v1937, %v1933
    %v2448 = vpack.c.bf16 %v1939, %v1935
    %v2449 = vpack.c.bf16 %v2323, %v2319
    %v2450 = vpack.c.bf16 %v2325, %v2321
    %v2451 = vpack.c.bf16 %v1947, %v1943
    %v2452 = vpack.c.bf16 %v1949, %v1945
    %v2453 = vpack.c.bf16 %v2333, %v2329
    %v2454 = vpack.c.bf16 %v2335, %v2331
    %v2455 = vpack.c.bf16 %v1957, %v1953
    %v2456 = vpack.c.bf16 %v1959, %v1955
    %v2457 = vpack.c.bf16 %v2343, %v2339
    %v2458 = vpack.c.bf16 %v2345, %v2341
    %v2459 = vpack.c.bf16 %v1967, %v1963
    %v2460 = vpack.c.bf16 %v1969, %v1965
    %v2461 = vpack.c.bf16 %v2353, %v2349
    %v2462 = vpack.c.bf16 %v2355, %v2351
    %v2463 = vpack.c.bf16 %v1977, %v1973
    %v2464 = vpack.c.bf16 %v1979, %v1975
    %v2465 = vpack.c.bf16 %v2363, %v2359
    %v2466 = vpack.c.bf16 %v2365, %v2361
    %v2467 = vpack.c.bf16 %v1987, %v1983
    %v2468 = vpack.c.bf16 %v1989, %v1985
    %v2469 = vpack.c.bf16 %v2373, %v2369
    %v2470 = vpack.c.bf16 %v2375, %v2371
    %v2471 = vpack.c.bf16 %v1997, %v1993
    %v2472 = vpack.c.bf16 %v1999, %v1995
    %v2473 = vpack.c.bf16 %v2383, %v2379
    %v2474 = vpack.c.bf16 %v2385, %v2381
    %v2475 = vpack.c.bf16 %v2007, %v2003
    %v2476 = vpack.c.bf16 %v2009, %v2005
    %v2477 = vpack.c.bf16 %v2393, %v2389
    %v2478 = vpack.c.bf16 %v2395, %v2391
    %v2479 = vpack.c.bf16 %v2017, %v2013
    %v2480 = vpack.c.bf16 %v2019, %v2015
    %v2481 = vpack.c.bf16 %v2403, %v2399
    %v2482 = vpack.c.bf16 %v2405, %v2401
    %v2483 = vpack.c.bf16 %v2027, %v2023
    %v2484 = vpack.c.bf16 %v2029, %v2025
    %v2485 = vpack.c.bf16 %v2413, %v2409
    %v2486 = vpack.c.bf16 %v2415, %v2411
    %v2487 = vpack.c.bf16 %v2037, %v2033
    %v2488 = vpack.c.bf16 %v2039, %v2035
    %v2489 = vpack.c.bf16 %v2423, %v2419
    %v2490 = vpack.c.bf16 %v2425, %v2421
    %v2492 = vlaneseq
    %v2493 = vshrl.u32 %v2492, 7
    %v2494 = vsub.s32 0, %v2493
    %v2495 = vrot.slane %v212, %v2494
    %v2496 = vlaneseq
    %v2497 = vshrl.u32 %v2496, 7
    %v2498 = vsub.s32 1, %v2497
    %v2499 = vrot.slane %v212, %v2498
    %v2500 = vlaneseq
    %v2501 = vshrl.u32 %v2500, 7
    %v2502 = vsub.s32 2, %v2501
    %v2503 = vrot.slane %v212, %v2502
    %v2504 = vlaneseq
    %v2505 = vshrl.u32 %v2504, 7
    %v2506 = vsub.s32 3, %v2505
    %v2507 = vrot.slane %v212, %v2506
    %v2512 = vpack.c.bf16 %v2495, %v2495
    %v2513 = vpack.c.bf16 %v2499, %v2499
    %v2514 = vpack.c.bf16 %v2503, %v2503
    %v2515 = vpack.c.bf16 %v2507, %v2507
    %v2517 = vpack.i.b16 %v2512, %v2512
    %v2519 = vlaneseq
    %v2520 = vshrl.u32 %v2519, 7
    %v2521 = vsub.s32 0, %v2520
    %v2522 = vrot.slane %v2517, %v2521
    %v2524 = vpack.i.b16 %v2513, %v2513
    %v2526 = vlaneseq
    %v2527 = vshrl.u32 %v2526, 7
    %v2528 = vsub.s32 0, %v2527
    %v2529 = vrot.slane %v2524, %v2528
    %v2531 = vpack.i.b16 %v2514, %v2514
    %v2533 = vlaneseq
    %v2534 = vshrl.u32 %v2533, 7
    %v2535 = vsub.s32 0, %v2534
    %v2536 = vrot.slane %v2531, %v2535
    %v2538 = vpack.i.b16 %v2515, %v2515
    %v2540 = vlaneseq
    %v2541 = vshrl.u32 %v2540, 7
    %v2542 = vsub.s32 0, %v2541
    %v2543 = vrot.slane %v2538, %v2542
    %v2544 = vadd.bf16 %v2427, %v2522
    %v2545 = vadd.bf16 %v2428, %v2529
    %v2546 = vadd.bf16 %v2429, %v2536
    %v2547 = vadd.bf16 %v2430, %v2543
    %v2548 = vadd.bf16 %v2431, %v2522
    %v2549 = vadd.bf16 %v2432, %v2529
    %v2550 = vadd.bf16 %v2433, %v2536
    %v2551 = vadd.bf16 %v2434, %v2543
    %v2552 = vadd.bf16 %v2435, %v2522
    %v2553 = vadd.bf16 %v2436, %v2529
    %v2554 = vadd.bf16 %v2437, %v2536
    %v2555 = vadd.bf16 %v2438, %v2543
    %v2556 = vadd.bf16 %v2439, %v2522
    %v2557 = vadd.bf16 %v2440, %v2529
    %v2558 = vadd.bf16 %v2441, %v2536
    %v2559 = vadd.bf16 %v2442, %v2543
    %v2560 = vadd.bf16 %v2443, %v2522
    %v2561 = vadd.bf16 %v2444, %v2529
    %v2562 = vadd.bf16 %v2445, %v2536
    %v2563 = vadd.bf16 %v2446, %v2543
    %v2564 = vadd.bf16 %v2447, %v2522
    %v2565 = vadd.bf16 %v2448, %v2529
    %v2566 = vadd.bf16 %v2449, %v2536
    %v2567 = vadd.bf16 %v2450, %v2543
    %v2568 = vadd.bf16 %v2451, %v2522
    %v2569 = vadd.bf16 %v2452, %v2529
    %v2570 = vadd.bf16 %v2453, %v2536
    %v2571 = vadd.bf16 %v2454, %v2543
    %v2572 = vadd.bf16 %v2455, %v2522
    %v2573 = vadd.bf16 %v2456, %v2529
    %v2574 = vadd.bf16 %v2457, %v2536
    %v2575 = vadd.bf16 %v2458, %v2543
    %v2576 = vadd.bf16 %v2459, %v2522
    %v2577 = vadd.bf16 %v2460, %v2529
    %v2578 = vadd.bf16 %v2461, %v2536
    %v2579 = vadd.bf16 %v2462, %v2543
    %v2580 = vadd.bf16 %v2463, %v2522
    %v2581 = vadd.bf16 %v2464, %v2529
    %v2582 = vadd.bf16 %v2465, %v2536
    %v2583 = vadd.bf16 %v2466, %v2543
    %v2584 = vadd.bf16 %v2467, %v2522
    %v2585 = vadd.bf16 %v2468, %v2529
    %v2586 = vadd.bf16 %v2469, %v2536
    %v2587 = vadd.bf16 %v2470, %v2543
    %v2588 = vadd.bf16 %v2471, %v2522
    %v2589 = vadd.bf16 %v2472, %v2529
    %v2590 = vadd.bf16 %v2473, %v2536
    %v2591 = vadd.bf16 %v2474, %v2543
    %v2592 = vadd.bf16 %v2475, %v2522
    %v2593 = vadd.bf16 %v2476, %v2529
    %v2594 = vadd.bf16 %v2477, %v2536
    %v2595 = vadd.bf16 %v2478, %v2543
    %v2596 = vadd.bf16 %v2479, %v2522
    %v2597 = vadd.bf16 %v2480, %v2529
    %v2598 = vadd.bf16 %v2481, %v2536
    %v2599 = vadd.bf16 %v2482, %v2543
    %v2600 = vadd.bf16 %v2483, %v2522
    %v2601 = vadd.bf16 %v2484, %v2529
    %v2602 = vadd.bf16 %v2485, %v2536
    %v2603 = vadd.bf16 %v2486, %v2543
    %v2604 = vadd.bf16 %v2487, %v2522
    %v2605 = vadd.bf16 %v2488, %v2529
    %v2606 = vadd.bf16 %v2489, %v2536
    %v2607 = vadd.bf16 %v2490, %v2543
    %v2608 = vmul.bf16 %v2544, 1028472141
    %v2609 = vmul.bf16 %v2545, 1028472141
    %v2610 = vmul.bf16 %v2546, 1028472141
    %v2611 = vmul.bf16 %v2547, 1028472141
    %v2612 = vmul.bf16 %v2548, 1028472141
    %v2613 = vmul.bf16 %v2549, 1028472141
    %v2614 = vmul.bf16 %v2550, 1028472141
    %v2615 = vmul.bf16 %v2551, 1028472141
    %v2616 = vmul.bf16 %v2552, 1028472141
    %v2617 = vmul.bf16 %v2553, 1028472141
    %v2618 = vmul.bf16 %v2554, 1028472141
    %v2619 = vmul.bf16 %v2555, 1028472141
    %v2620 = vmul.bf16 %v2556, 1028472141
    %v2621 = vmul.bf16 %v2557, 1028472141
    %v2622 = vmul.bf16 %v2558, 1028472141
    %v2623 = vmul.bf16 %v2559, 1028472141
    %v2624 = vmul.bf16 %v2560, 1028472141
    %v2625 = vmul.bf16 %v2561, 1028472141
    %v2626 = vmul.bf16 %v2562, 1028472141
    %v2627 = vmul.bf16 %v2563, 1028472141
    %v2628 = vmul.bf16 %v2564, 1028472141
    %v2629 = vmul.bf16 %v2565, 1028472141
    %v2630 = vmul.bf16 %v2566, 1028472141
    %v2631 = vmul.bf16 %v2567, 1028472141
    %v2632 = vmul.bf16 %v2568, 1028472141
    %v2633 = vmul.bf16 %v2569, 1028472141
    %v2634 = vmul.bf16 %v2570, 1028472141
    %v2635 = vmul.bf16 %v2571, 1028472141
    %v2636 = vmul.bf16 %v2572, 1028472141
    %v2637 = vmul.bf16 %v2573, 1028472141
    %v2638 = vmul.bf16 %v2574, 1028472141
    %v2639 = vmul.bf16 %v2575, 1028472141
    %v2640 = vmul.bf16 %v2576, 1028472141
    %v2641 = vmul.bf16 %v2577, 1028472141
    %v2642 = vmul.bf16 %v2578, 1028472141
    %v2643 = vmul.bf16 %v2579, 1028472141
    %v2644 = vmul.bf16 %v2580, 1028472141
    %v2645 = vmul.bf16 %v2581, 1028472141
    %v2646 = vmul.bf16 %v2582, 1028472141
    %v2647 = vmul.bf16 %v2583, 1028472141
    %v2648 = vmul.bf16 %v2584, 1028472141
    %v2649 = vmul.bf16 %v2585, 1028472141
    %v2650 = vmul.bf16 %v2586, 1028472141
    %v2651 = vmul.bf16 %v2587, 1028472141
    %v2652 = vmul.bf16 %v2588, 1028472141
    %v2653 = vmul.bf16 %v2589, 1028472141
    %v2654 = vmul.bf16 %v2590, 1028472141
    %v2655 = vmul.bf16 %v2591, 1028472141
    %v2656 = vmul.bf16 %v2592, 1028472141
    %v2657 = vmul.bf16 %v2593, 1028472141
    %v2658 = vmul.bf16 %v2594, 1028472141
    %v2659 = vmul.bf16 %v2595, 1028472141
    %v2660 = vmul.bf16 %v2596, 1028472141
    %v2661 = vmul.bf16 %v2597, 1028472141
    %v2662 = vmul.bf16 %v2598, 1028472141
    %v2663 = vmul.bf16 %v2599, 1028472141
    %v2664 = vmul.bf16 %v2600, 1028472141
    %v2665 = vmul.bf16 %v2601, 1028472141
    %v2666 = vmul.bf16 %v2602, 1028472141
    %v2667 = vmul.bf16 %v2603, 1028472141
    %v2668 = vmul.bf16 %v2604, 1028472141
    %v2669 = vmul.bf16 %v2605, 1028472141
    %v2670 = vmul.bf16 %v2606, 1028472141
    %v2671 = vmul.bf16 %v2607, 1028472141
    %v2672 = vmax.bf16 %v2544, %v2608
    %v2673 = vmax.bf16 %v2545, %v2609
    %v2674 = vmax.bf16 %v2546, %v2610
    %v2675 = vmax.bf16 %v2547, %v2611
    %v2676 = vmax.bf16 %v2548, %v2612
    %v2677 = vmax.bf16 %v2549, %v2613
    %v2678 = vmax.bf16 %v2550, %v2614
    %v2679 = vmax.bf16 %v2551, %v2615
    %v2680 = vmax.bf16 %v2552, %v2616
    %v2681 = vmax.bf16 %v2553, %v2617
    %v2682 = vmax.bf16 %v2554, %v2618
    %v2683 = vmax.bf16 %v2555, %v2619
    %v2684 = vmax.bf16 %v2556, %v2620
    %v2685 = vmax.bf16 %v2557, %v2621
    %v2686 = vmax.bf16 %v2558, %v2622
    %v2687 = vmax.bf16 %v2559, %v2623
    %v2688 = vmax.bf16 %v2560, %v2624
    %v2689 = vmax.bf16 %v2561, %v2625
    %v2690 = vmax.bf16 %v2562, %v2626
    %v2691 = vmax.bf16 %v2563, %v2627
    %v2692 = vmax.bf16 %v2564, %v2628
    %v2693 = vmax.bf16 %v2565, %v2629
    %v2694 = vmax.bf16 %v2566, %v2630
    %v2695 = vmax.bf16 %v2567, %v2631
    %v2696 = vmax.bf16 %v2568, %v2632
    %v2697 = vmax.bf16 %v2569, %v2633
    %v2698 = vmax.bf16 %v2570, %v2634
    %v2699 = vmax.bf16 %v2571, %v2635
    %v2700 = vmax.bf16 %v2572, %v2636
    %v2701 = vmax.bf16 %v2573, %v2637
    %v2702 = vmax.bf16 %v2574, %v2638
    %v2703 = vmax.bf16 %v2575, %v2639
    %v2704 = vmax.bf16 %v2576, %v2640
    %v2705 = vmax.bf16 %v2577, %v2641
    %v2706 = vmax.bf16 %v2578, %v2642
    %v2707 = vmax.bf16 %v2579, %v2643
    %v2708 = vmax.bf16 %v2580, %v2644
    %v2709 = vmax.bf16 %v2581, %v2645
    %v2710 = vmax.bf16 %v2582, %v2646
    %v2711 = vmax.bf16 %v2583, %v2647
    %v2712 = vmax.bf16 %v2584, %v2648
    %v2713 = vmax.bf16 %v2585, %v2649
    %v2714 = vmax.bf16 %v2586, %v2650
    %v2715 = vmax.bf16 %v2587, %v2651
    %v2716 = vmax.bf16 %v2588, %v2652
    %v2717 = vmax.bf16 %v2589, %v2653
    %v2718 = vmax.bf16 %v2590, %v2654
    %v2719 = vmax.bf16 %v2591, %v2655
    %v2720 = vmax.bf16 %v2592, %v2656
    %v2721 = vmax.bf16 %v2593, %v2657
    %v2722 = vmax.bf16 %v2594, %v2658
    %v2723 = vmax.bf16 %v2595, %v2659
    %v2724 = vmax.bf16 %v2596, %v2660
    %v2725 = vmax.bf16 %v2597, %v2661
    %v2726 = vmax.bf16 %v2598, %v2662
    %v2727 = vmax.bf16 %v2599, %v2663
    %v2728 = vmax.bf16 %v2600, %v2664
    %v2729 = vmax.bf16 %v2601, %v2665
    %v2730 = vmax.bf16 %v2602, %v2666
    %v2731 = vmax.bf16 %v2603, %v2667
    %v2732 = vmax.bf16 %v2604, %v2668
    %v2733 = vmax.bf16 %v2605, %v2669
    %v2734 = vmax.bf16 %v2606, %v2670
    %v2735 = vmax.bf16 %v2607, %v2671
    %v2738 = vunpack.c.l.s4 1966171168
    %v2739 = vunpack.c.0.s8 %v2738
    %v2740 = vlaneseq
    %v2741 = vshrl.u32 %v2740, 7
    %v2742 = vsub.s32 %v2739, %v2741
    %v2743 = vrot.slane %v213, %v2742
    %v2744 = vcombine.high %v2743, %v2743
    %v2746 = vunpack.c.l.s4 1966171168
    %v2747 = vunpack.c.0.s8 %v2746
    %v2748 = vlaneseq
    %v2749 = vshrl.u32 %v2748, 7
    %v2750 = vsub.s32 %v2747, %v2749
    %v2751 = vrot.slane %v2743, %v2750
    %v2753 = vunpack.c.l.s4 1966171168
    %v2754 = vunpack.c.0.s8 %v2753
    %v2755 = vlaneseq
    %v2756 = vshrl.u32 %v2755, 7
    %v2757 = vsub.s32 %v2754, %v2756
    %v2758 = vrot.slane %v2744, %v2757
    %v2759 = vcombine.high %v2751, %v2751
    %v2760 = vcombine.high %v2758, %v2758
    %v2762 = vpack.i.b16 %v2751, %v2751
    %v2764 = vlaneseq
    %v2765 = vshrl.u32 %v2764, 7
    %v2766 = vsub.s32 0, %v2765
    %v2767 = vrot.slane %v2762, %v2766
    %v2769 = vpack.i.b16 %v2758, %v2758
    %v2771 = vlaneseq
    %v2772 = vshrl.u32 %v2771, 7
    %v2773 = vsub.s32 0, %v2772
    %v2774 = vrot.slane %v2769, %v2773
    %v2776 = vpack.i.b16 %v2759, %v2759
    %v2778 = vlaneseq
    %v2779 = vshrl.u32 %v2778, 7
    %v2780 = vsub.s32 0, %v2779
    %v2781 = vrot.slane %v2776, %v2780
    %v2783 = vpack.i.b16 %v2760, %v2760
    %v2785 = vlaneseq
    %v2786 = vshrl.u32 %v2785, 7
    %v2787 = vsub.s32 0, %v2786
    %v2788 = vrot.slane %v2783, %v2787
    %v2789 = vmul.bf16 %v2672, %v2767
    %v2790 = vmul.bf16 %v2673, %v2774
    %v2791 = vmul.bf16 %v2674, %v2781
    %v2792 = vmul.bf16 %v2675, %v2788
    %v2793 = vmul.bf16 %v2676, %v2767
    %v2794 = vmul.bf16 %v2677, %v2774
    %v2795 = vmul.bf16 %v2678, %v2781
    %v2796 = vmul.bf16 %v2679, %v2788
    %v2797 = vmul.bf16 %v2680, %v2767
    %v2798 = vmul.bf16 %v2681, %v2774
    %v2799 = vmul.bf16 %v2682, %v2781
    %v2800 = vmul.bf16 %v2683, %v2788
    %v2801 = vmul.bf16 %v2684, %v2767
    %v2802 = vmul.bf16 %v2685, %v2774
    %v2803 = vmul.bf16 %v2686, %v2781
    %v2804 = vmul.bf16 %v2687, %v2788
    %v2805 = vmul.bf16 %v2688, %v2767
    %v2806 = vmul.bf16 %v2689, %v2774
    %v2807 = vmul.bf16 %v2690, %v2781
    %v2808 = vmul.bf16 %v2691, %v2788
    %v2809 = vmul.bf16 %v2692, %v2767
    %v2810 = vmul.bf16 %v2693, %v2774
    %v2811 = vmul.bf16 %v2694, %v2781
    %v2812 = vmul.bf16 %v2695, %v2788
    %v2813 = vmul.bf16 %v2696, %v2767
    %v2814 = vmul.bf16 %v2697, %v2774
    %v2815 = vmul.bf16 %v2698, %v2781
    %v2816 = vmul.bf16 %v2699, %v2788
    %v2817 = vmul.bf16 %v2700, %v2767
    %v2818 = vmul.bf16 %v2701, %v2774
    %v2819 = vmul.bf16 %v2702, %v2781
    %v2820 = vmul.bf16 %v2703, %v2788
    %v2821 = vmul.bf16 %v2704, %v2767
    %v2822 = vmul.bf16 %v2705, %v2774
    %v2823 = vmul.bf16 %v2706, %v2781
    %v2824 = vmul.bf16 %v2707, %v2788
    %v2825 = vmul.bf16 %v2708, %v2767
    %v2826 = vmul.bf16 %v2709, %v2774
    %v2827 = vmul.bf16 %v2710, %v2781
    %v2828 = vmul.bf16 %v2711, %v2788
    %v2829 = vmul.bf16 %v2712, %v2767
    %v2830 = vmul.bf16 %v2713, %v2774
    %v2831 = vmul.bf16 %v2714, %v2781
    %v2832 = vmul.bf16 %v2715, %v2788
    %v2833 = vmul.bf16 %v2716, %v2767
    %v2834 = vmul.bf16 %v2717, %v2774
    %v2835 = vmul.bf16 %v2718, %v2781
    %v2836 = vmul.bf16 %v2719, %v2788
    %v2837 = vmul.bf16 %v2720, %v2767
    %v2838 = vmul.bf16 %v2721, %v2774
    %v2839 = vmul.bf16 %v2722, %v2781
    %v2840 = vmul.bf16 %v2723, %v2788
    %v2841 = vmul.bf16 %v2724, %v2767
    %v2842 = vmul.bf16 %v2725, %v2774
    %v2843 = vmul.bf16 %v2726, %v2781
    %v2844 = vmul.bf16 %v2727, %v2788
    %v2845 = vmul.bf16 %v2728, %v2767
    %v2846 = vmul.bf16 %v2729, %v2774
    %v2847 = vmul.bf16 %v2730, %v2781
    %v2848 = vmul.bf16 %v2731, %v2788
    %v2849 = vmul.bf16 %v2732, %v2767
    %v2850 = vmul.bf16 %v2733, %v2774
    %v2851 = vmul.bf16 %v2734, %v2781
    %v2852 = vmul.bf16 %v2735, %v2788
    %v2853 = vunpack.c.l.bf16 %v2789
    %v2854 = vunpack.c.h.bf16 %v2789
    %v2855 = vunpack.c.l.bf16 %v2793
    %v2856 = vunpack.c.h.bf16 %v2793
    %v2857 = vunpack.c.l.bf16 %v2797
    %v2858 = vunpack.c.h.bf16 %v2797
    %v2859 = vunpack.c.l.bf16 %v2801
    %v2860 = vunpack.c.h.bf16 %v2801
    %v2861 = vunpack.c.l.bf16 %v2805
    %v2862 = vunpack.c.h.bf16 %v2805
    %v2863 = vunpack.c.l.bf16 %v2809
    %v2864 = vunpack.c.h.bf16 %v2809
    %v2865 = vunpack.c.l.bf16 %v2813
    %v2866 = vunpack.c.h.bf16 %v2813
    %v2867 = vunpack.c.l.bf16 %v2817
    %v2868 = vunpack.c.h.bf16 %v2817
    %v2869 = vunpack.c.l.bf16 %v2821
    %v2870 = vunpack.c.h.bf16 %v2821
    %v2871 = vunpack.c.l.bf16 %v2825
    %v2872 = vunpack.c.h.bf16 %v2825
    %v2873 = vunpack.c.l.bf16 %v2829
    %v2874 = vunpack.c.h.bf16 %v2829
    %v2875 = vunpack.c.l.bf16 %v2833
    %v2876 = vunpack.c.h.bf16 %v2833
    %v2877 = vunpack.c.l.bf16 %v2837
    %v2878 = vunpack.c.h.bf16 %v2837
    %v2879 = vunpack.c.l.bf16 %v2841
    %v2880 = vunpack.c.h.bf16 %v2841
    %v2881 = vunpack.c.l.bf16 %v2845
    %v2882 = vunpack.c.h.bf16 %v2845
    %v2883 = vunpack.c.l.bf16 %v2849
    %v2884 = vunpack.c.h.bf16 %v2849
    %v2885 = vunpack.c.l.bf16 %v2790
    %v2886 = vunpack.c.h.bf16 %v2790
    %v2887 = vunpack.c.l.bf16 %v2794
    %v2888 = vunpack.c.h.bf16 %v2794
    %v2889 = vunpack.c.l.bf16 %v2798
    %v2890 = vunpack.c.h.bf16 %v2798
    %v2891 = vunpack.c.l.bf16 %v2802
    %v2892 = vunpack.c.h.bf16 %v2802
    %v2893 = vunpack.c.l.bf16 %v2806
    %v2894 = vunpack.c.h.bf16 %v2806
    %v2895 = vunpack.c.l.bf16 %v2810
    %v2896 = vunpack.c.h.bf16 %v2810
    %v2897 = vunpack.c.l.bf16 %v2814
    %v2898 = vunpack.c.h.bf16 %v2814
    %v2899 = vunpack.c.l.bf16 %v2818
    %v2900 = vunpack.c.h.bf16 %v2818
    %v2901 = vunpack.c.l.bf16 %v2822
    %v2902 = vunpack.c.h.bf16 %v2822
    %v2903 = vunpack.c.l.bf16 %v2826
    %v2904 = vunpack.c.h.bf16 %v2826
    %v2905 = vunpack.c.l.bf16 %v2830
    %v2906 = vunpack.c.h.bf16 %v2830
    %v2907 = vunpack.c.l.bf16 %v2834
    %v2908 = vunpack.c.h.bf16 %v2834
    %v2909 = vunpack.c.l.bf16 %v2838
    %v2910 = vunpack.c.h.bf16 %v2838
    %v2911 = vunpack.c.l.bf16 %v2842
    %v2912 = vunpack.c.h.bf16 %v2842
    %v2913 = vunpack.c.l.bf16 %v2846
    %v2914 = vunpack.c.h.bf16 %v2846
    %v2915 = vunpack.c.l.bf16 %v2850
    %v2916 = vunpack.c.h.bf16 %v2850
    %v2917 = vadd.f32 %v2853, %v2885
    %v2918 = vadd.f32 %v2854, %v2886
    %v2919 = vadd.f32 %v2855, %v2887
    %v2920 = vadd.f32 %v2856, %v2888
    %v2921 = vadd.f32 %v2857, %v2889
    %v2922 = vadd.f32 %v2858, %v2890
    %v2923 = vadd.f32 %v2859, %v2891
    %v2924 = vadd.f32 %v2860, %v2892
    %v2925 = vadd.f32 %v2861, %v2893
    %v2926 = vadd.f32 %v2862, %v2894
    %v2927 = vadd.f32 %v2863, %v2895
    %v2928 = vadd.f32 %v2864, %v2896
    %v2929 = vadd.f32 %v2865, %v2897
    %v2930 = vadd.f32 %v2866, %v2898
    %v2931 = vadd.f32 %v2867, %v2899
    %v2932 = vadd.f32 %v2868, %v2900
    %v2933 = vadd.f32 %v2869, %v2901
    %v2934 = vadd.f32 %v2870, %v2902
    %v2935 = vadd.f32 %v2871, %v2903
    %v2936 = vadd.f32 %v2872, %v2904
    %v2937 = vadd.f32 %v2873, %v2905
    %v2938 = vadd.f32 %v2874, %v2906
    %v2939 = vadd.f32 %v2875, %v2907
    %v2940 = vadd.f32 %v2876, %v2908
    %v2941 = vadd.f32 %v2877, %v2909
    %v2942 = vadd.f32 %v2878, %v2910
    %v2943 = vadd.f32 %v2879, %v2911
    %v2944 = vadd.f32 %v2880, %v2912
    %v2945 = vadd.f32 %v2881, %v2913
    %v2946 = vadd.f32 %v2882, %v2914
    %v2947 = vadd.f32 %v2883, %v2915
    %v2948 = vadd.f32 %v2884, %v2916
    %v2949 = vunpack.c.l.bf16 %v2791
    %v2950 = vunpack.c.h.bf16 %v2791
    %v2951 = vunpack.c.l.bf16 %v2795
    %v2952 = vunpack.c.h.bf16 %v2795
    %v2953 = vunpack.c.l.bf16 %v2799
    %v2954 = vunpack.c.h.bf16 %v2799
    %v2955 = vunpack.c.l.bf16 %v2803
    %v2956 = vunpack.c.h.bf16 %v2803
    %v2957 = vunpack.c.l.bf16 %v2807
    %v2958 = vunpack.c.h.bf16 %v2807
    %v2959 = vunpack.c.l.bf16 %v2811
    %v2960 = vunpack.c.h.bf16 %v2811
    %v2961 = vunpack.c.l.bf16 %v2815
    %v2962 = vunpack.c.h.bf16 %v2815
    %v2963 = vunpack.c.l.bf16 %v2819
    %v2964 = vunpack.c.h.bf16 %v2819
    %v2965 = vunpack.c.l.bf16 %v2823
    %v2966 = vunpack.c.h.bf16 %v2823
    %v2967 = vunpack.c.l.bf16 %v2827
    %v2968 = vunpack.c.h.bf16 %v2827
    %v2969 = vunpack.c.l.bf16 %v2831
    %v2970 = vunpack.c.h.bf16 %v2831
    %v2971 = vunpack.c.l.bf16 %v2835
    %v2972 = vunpack.c.h.bf16 %v2835
    %v2973 = vunpack.c.l.bf16 %v2839
    %v2974 = vunpack.c.h.bf16 %v2839
    %v2975 = vunpack.c.l.bf16 %v2843
    %v2976 = vunpack.c.h.bf16 %v2843
    %v2977 = vunpack.c.l.bf16 %v2847
    %v2978 = vunpack.c.h.bf16 %v2847
    %v2979 = vunpack.c.l.bf16 %v2851
    %v2980 = vunpack.c.h.bf16 %v2851
    %v2981 = vadd.f32 %v2917, %v2949
    %v2982 = vadd.f32 %v2918, %v2950
    %v2983 = vadd.f32 %v2919, %v2951
    %v2984 = vadd.f32 %v2920, %v2952
    %v2985 = vadd.f32 %v2921, %v2953
    %v2986 = vadd.f32 %v2922, %v2954
    %v2987 = vadd.f32 %v2923, %v2955
    %v2988 = vadd.f32 %v2924, %v2956
    %v2989 = vadd.f32 %v2925, %v2957
    %v2990 = vadd.f32 %v2926, %v2958
    %v2991 = vadd.f32 %v2927, %v2959
    %v2992 = vadd.f32 %v2928, %v2960
    %v2993 = vadd.f32 %v2929, %v2961
    %v2994 = vadd.f32 %v2930, %v2962
    %v2995 = vadd.f32 %v2931, %v2963
    %v2996 = vadd.f32 %v2932, %v2964
    %v2997 = vadd.f32 %v2933, %v2965
    %v2998 = vadd.f32 %v2934, %v2966
    %v2999 = vadd.f32 %v2935, %v2967
    %v3000 = vadd.f32 %v2936, %v2968
    %v3001 = vadd.f32 %v2937, %v2969
    %v3002 = vadd.f32 %v2938, %v2970
    %v3003 = vadd.f32 %v2939, %v2971
    %v3004 = vadd.f32 %v2940, %v2972
    %v3005 = vadd.f32 %v2941, %v2973
    %v3006 = vadd.f32 %v2942, %v2974
    %v3007 = vadd.f32 %v2943, %v2975
    %v3008 = vadd.f32 %v2944, %v2976
    %v3009 = vadd.f32 %v2945, %v2977
    %v3010 = vadd.f32 %v2946, %v2978
    %v3011 = vadd.f32 %v2947, %v2979
    %v3012 = vadd.f32 %v2948, %v2980
    %v3013 = vunpack.c.l.bf16 %v2792
    %v3014 = vunpack.c.h.bf16 %v2792
    %v3015 = vunpack.c.l.bf16 %v2796
    %v3016 = vunpack.c.h.bf16 %v2796
    %v3017 = vunpack.c.l.bf16 %v2800
    %v3018 = vunpack.c.h.bf16 %v2800
    %v3019 = vunpack.c.l.bf16 %v2804
    %v3020 = vunpack.c.h.bf16 %v2804
    %v3021 = vunpack.c.l.bf16 %v2808
    %v3022 = vunpack.c.h.bf16 %v2808
    %v3023 = vunpack.c.l.bf16 %v2812
    %v3024 = vunpack.c.h.bf16 %v2812
    %v3025 = vunpack.c.l.bf16 %v2816
    %v3026 = vunpack.c.h.bf16 %v2816
    %v3027 = vunpack.c.l.bf16 %v2820
    %v3028 = vunpack.c.h.bf16 %v2820
    %v3029 = vunpack.c.l.bf16 %v2824
    %v3030 = vunpack.c.h.bf16 %v2824
    %v3031 = vunpack.c.l.bf16 %v2828
    %v3032 = vunpack.c.h.bf16 %v2828
    %v3033 = vunpack.c.l.bf16 %v2832
    %v3034 = vunpack.c.h.bf16 %v2832
    %v3035 = vunpack.c.l.bf16 %v2836
    %v3036 = vunpack.c.h.bf16 %v2836
    %v3037 = vunpack.c.l.bf16 %v2840
    %v3038 = vunpack.c.h.bf16 %v2840
    %v3039 = vunpack.c.l.bf16 %v2844
    %v3040 = vunpack.c.h.bf16 %v2844
    %v3041 = vunpack.c.l.bf16 %v2848
    %v3042 = vunpack.c.h.bf16 %v2848
    %v3043 = vunpack.c.l.bf16 %v2852
    %v3044 = vunpack.c.h.bf16 %v2852
    %v3045 = vadd.f32 %v2981, %v3013
    %v3046 = vadd.f32 %v2982, %v3014
    %v3047 = vadd.f32 %v2983, %v3015
    %v3048 = vadd.f32 %v2984, %v3016
    %v3049 = vadd.f32 %v2985, %v3017
    %v3050 = vadd.f32 %v2986, %v3018
    %v3051 = vadd.f32 %v2987, %v3019
    %v3052 = vadd.f32 %v2988, %v3020
    %v3053 = vadd.f32 %v2989, %v3021
    %v3054 = vadd.f32 %v2990, %v3022
    %v3055 = vadd.f32 %v2991, %v3023
    %v3056 = vadd.f32 %v2992, %v3024
    %v3057 = vadd.f32 %v2993, %v3025
    %v3058 = vadd.f32 %v2994, %v3026
    %v3059 = vadd.f32 %v2995, %v3027
    %v3060 = vadd.f32 %v2996, %v3028
    %v3061 = vadd.f32 %v2997, %v3029
    %v3062 = vadd.f32 %v2998, %v3030
    %v3063 = vadd.f32 %v2999, %v3031
    %v3064 = vadd.f32 %v3000, %v3032
    %v3065 = vadd.f32 %v3001, %v3033
    %v3066 = vadd.f32 %v3002, %v3034
    %v3067 = vadd.f32 %v3003, %v3035
    %v3068 = vadd.f32 %v3004, %v3036
    %v3069 = vadd.f32 %v3005, %v3037
    %v3070 = vadd.f32 %v3006, %v3038
    %v3071 = vadd.f32 %v3007, %v3039
    %v3072 = vadd.f32 %v3008, %v3040
    %v3073 = vadd.f32 %v3009, %v3041
    %v3074 = vadd.f32 %v3010, %v3042
    %v3075 = vadd.f32 %v3011, %v3043
    %v3076 = vadd.f32 %v3012, %v3044
    %3077 = vadd.xlane.f32.xlu0 %v3045
    %v3078 = vpop.xlane.xlu0 %3077
    %3079 = vadd.xlane.f32.xlu0 %v3046
    %v3080 = vpop.xlane.xlu0 %3079
    %3081 = vadd.xlane.f32.xlu0 %v3047
    %v3082 = vpop.xlane.xlu0 %3081
    %3083 = vadd.xlane.f32.xlu0 %v3048
    %v3084 = vpop.xlane.xlu0 %3083
    %3085 = vadd.xlane.f32.xlu0 %v3049
    %v3086 = vpop.xlane.xlu0 %3085
    %3087 = vadd.xlane.f32.xlu0 %v3050
    %v3088 = vpop.xlane.xlu0 %3087
    %3089 = vadd.xlane.f32.xlu0 %v3051
    %v3090 = vpop.xlane.xlu0 %3089
    %3091 = vadd.xlane.f32.xlu0 %v3052
    %v3092 = vpop.xlane.xlu0 %3091
    %3093 = vadd.xlane.f32.xlu0 %v3053
    %v3094 = vpop.xlane.xlu0 %3093
    %3095 = vadd.xlane.f32.xlu0 %v3054
    %v3096 = vpop.xlane.xlu0 %3095
    %3097 = vadd.xlane.f32.xlu0 %v3055
    %v3098 = vpop.xlane.xlu0 %3097
    %3099 = vadd.xlane.f32.xlu0 %v3056
    %v3100 = vpop.xlane.xlu0 %3099
    %3101 = vadd.xlane.f32.xlu0 %v3057
    %v3102 = vpop.xlane.xlu0 %3101
    %3103 = vadd.xlane.f32.xlu0 %v3058
    %v3104 = vpop.xlane.xlu0 %3103
    %3105 = vadd.xlane.f32.xlu0 %v3059
    %v3106 = vpop.xlane.xlu0 %3105
    %3107 = vadd.xlane.f32.xlu0 %v3060
    %v3108 = vpop.xlane.xlu0 %3107
    %3109 = vadd.xlane.f32.xlu0 %v3061
    %v3110 = vpop.xlane.xlu0 %3109
    %3111 = vadd.xlane.f32.xlu0 %v3062
    %v3112 = vpop.xlane.xlu0 %3111
    %3113 = vadd.xlane.f32.xlu0 %v3063
    %v3114 = vpop.xlane.xlu0 %3113
    %3115 = vadd.xlane.f32.xlu0 %v3064
    %v3116 = vpop.xlane.xlu0 %3115
    %3117 = vadd.xlane.f32.xlu0 %v3065
    %v3118 = vpop.xlane.xlu0 %3117
    %3119 = vadd.xlane.f32.xlu0 %v3066
    %v3120 = vpop.xlane.xlu0 %3119
    %3121 = vadd.xlane.f32.xlu0 %v3067
    %v3122 = vpop.xlane.xlu0 %3121
    %3123 = vadd.xlane.f32.xlu0 %v3068
    %v3124 = vpop.xlane.xlu0 %3123
    %3125 = vadd.xlane.f32.xlu0 %v3069
    %v3126 = vpop.xlane.xlu0 %3125
    %3127 = vadd.xlane.f32.xlu0 %v3070
    %v3128 = vpop.xlane.xlu0 %3127
    %3129 = vadd.xlane.f32.xlu0 %v3071
    %v3130 = vpop.xlane.xlu0 %3129
    %3131 = vadd.xlane.f32.xlu0 %v3072
    %v3132 = vpop.xlane.xlu0 %3131
    %3133 = vadd.xlane.f32.xlu0 %v3073
    %v3134 = vpop.xlane.xlu0 %3133
    %3135 = vadd.xlane.f32.xlu0 %v3074
    %v3136 = vpop.xlane.xlu0 %3135
    %3137 = vadd.xlane.f32.xlu0 %v3075
    %v3138 = vpop.xlane.xlu0 %3137
    %3139 = vadd.xlane.f32.xlu0 %v3076
    %v3140 = vpop.xlane.xlu0 %3139
    %v3141 = vstv %s214
    %v3142 = vadd.f32 %v3078, %v3141
    %v3143 = vadd.f32 %v3080, %v3141
    %v3144 = vadd.f32 %v3082, %v3141
    %v3145 = vadd.f32 %v3084, %v3141
    %v3146 = vadd.f32 %v3086, %v3141
    %v3147 = vadd.f32 %v3088, %v3141
    %v3148 = vadd.f32 %v3090, %v3141
    %v3149 = vadd.f32 %v3092, %v3141
    %v3150 = vadd.f32 %v3094, %v3141
    %v3151 = vadd.f32 %v3096, %v3141
    %v3152 = vadd.f32 %v3098, %v3141
    %v3153 = vadd.f32 %v3100, %v3141
    %v3154 = vadd.f32 %v3102, %v3141
    %v3155 = vadd.f32 %v3104, %v3141
    %v3156 = vadd.f32 %v3106, %v3141
    %v3157 = vadd.f32 %v3108, %v3141
    %v3158 = vadd.f32 %v3110, %v3141
    %v3159 = vadd.f32 %v3112, %v3141
    %v3160 = vadd.f32 %v3114, %v3141
    %v3161 = vadd.f32 %v3116, %v3141
    %v3162 = vadd.f32 %v3118, %v3141
    %v3163 = vadd.f32 %v3120, %v3141
    %v3164 = vadd.f32 %v3122, %v3141
    %v3165 = vadd.f32 %v3124, %v3141
    %v3166 = vadd.f32 %v3126, %v3141
    %v3167 = vadd.f32 %v3128, %v3141
    %v3168 = vadd.f32 %v3130, %v3141
    %v3169 = vadd.f32 %v3132, %v3141
    %v3170 = vadd.f32 %v3134, %v3141
    %v3171 = vadd.f32 %v3136, %v3141
    %v3172 = vadd.f32 %v3138, %v3141
    %v3173 = vadd.f32 %v3140, %v3141
    %vm3174 = vcmask 7168
    %3175 = vst.msk [vmem:[%s7] sm:$0xff] %vm3174, %v3142
    %3176 = vst.msk [vmem:[%s7 + $0x8] sm:$0xff] %vm3174, %v3143
    %3177 = vst.msk [vmem:[%s7 + $0x10] sm:$0xff] %vm3174, %v3144
    %3178 = vst.msk [vmem:[%s7 + $0x18] sm:$0xff] %vm3174, %v3145
    %3179 = vst.msk [vmem:[%s7 + $0x20] sm:$0xff] %vm3174, %v3146
    %3180 = vst.msk [vmem:[%s7 + $0x28] sm:$0xff] %vm3174, %v3147
    %3181 = vst.msk [vmem:[%s7 + $0x30] sm:$0xff] %vm3174, %v3148
    %3182 = vst.msk [vmem:[%s7 + $0x38] sm:$0xff] %vm3174, %v3149
    %3183 = vst.msk [vmem:[%s7 + $0x40] sm:$0xff] %vm3174, %v3150
    %3184 = vst.msk [vmem:[%s7 + $0x48] sm:$0xff] %vm3174, %v3151
    %3185 = vst.msk [vmem:[%s7 + $0x50] sm:$0xff] %vm3174, %v3152
    %3186 = vst.msk [vmem:[%s7 + $0x58] sm:$0xff] %vm3174, %v3153
    %3187 = vst.msk [vmem:[%s7 + $0x60] sm:$0xff] %vm3174, %v3154
    %3188 = vst.msk [vmem:[%s7 + $0x68] sm:$0xff] %vm3174, %v3155
    %3189 = vst.msk [vmem:[%s7 + $0x70] sm:$0xff] %vm3174, %v3156
    %3190 = vst.msk [vmem:[%s7 + $0x78] sm:$0xff] %vm3174, %v3157
    %3191 = vst.msk [vmem:[%s7 + $0x80] sm:$0xff] %vm3174, %v3158
    %3192 = vst.msk [vmem:[%s7 + $0x88] sm:$0xff] %vm3174, %v3159
    %3193 = vst.msk [vmem:[%s7 + $0x90] sm:$0xff] %vm3174, %v3160
    %3194 = vst.msk [vmem:[%s7 + $0x98] sm:$0xff] %vm3174, %v3161
    %3195 = vst.msk [vmem:[%s7 + $0xa0] sm:$0xff] %vm3174, %v3162
    %3196 = vst.msk [vmem:[%s7 + $0xa8] sm:$0xff] %vm3174, %v3163
    %3197 = vst.msk [vmem:[%s7 + $0xb0] sm:$0xff] %vm3174, %v3164
    %3198 = vst.msk [vmem:[%s7 + $0xb8] sm:$0xff] %vm3174, %v3165
    %3199 = vst.msk [vmem:[%s7 + $0xc0] sm:$0xff] %vm3174, %v3166
    %3200 = vst.msk [vmem:[%s7 + $0xc8] sm:$0xff] %vm3174, %v3167
    %3201 = vst.msk [vmem:[%s7 + $0xd0] sm:$0xff] %vm3174, %v3168
    %3202 = vst.msk [vmem:[%s7 + $0xd8] sm:$0xff] %vm3174, %v3169
    %3203 = vst.msk [vmem:[%s7 + $0xe0] sm:$0xff] %vm3174, %v3170
    %3204 = vst.msk [vmem:[%s7 + $0xe8] sm:$0xff] %vm3174, %v3171
    %3205 = vst.msk [vmem:[%s7 + $0xf0] sm:$0xff] %vm3174, %v3172
    %3206 = vst.msk [vmem:[%s7 + $0xf8] sm:$0xff] %vm3174, %v3173
    // Predicated region
    $region34: #{tpu_custom_call.1} parent=1 // pred_check
      _
    $region35: #{tpu_custom_call.1} parent=1 // pred_check_branch
      %3208 = sbr.rel (0) target = $region37
    $region36: #{tpu_custom_call.1} parent=1 // pred_region
      _
    $region37: #{tpu_custom_call.1} parent=1 // pred_fallthru
      _
    // Predicated region
    $region38: #{tpu_custom_call.1} parent=1 // pred_check
      _
    $region39: #{tpu_custom_call.1} parent=1 // pred_check_branch
      %3210 = sbr.rel (0) target = $region41
    $region40: #{tpu_custom_call.1} parent=1 // pred_region
      _
    $region41: #{tpu_custom_call.1} parent=1 // pred_fallthru
      _
    %3211 = vsyncpa [#allocation4], 1

</llo_original>
